<compile_context>
chip_gen: v7x
topology: tpu7x:2x2x1
jax: 0.10.0
libtpu: 0.0.40
codegen_flags: <defaults>
</compile_context>

<pallas_src>
import math
import numpy as np

import jax
import jax.numpy as jnp
from jax.experimental import pallas as pl
from jax.experimental.pallas import tpu as pltpu

# ----------------------------------------------------------------------------
# Model configuration (mirrors the module's __init__ with small shapes)
# ----------------------------------------------------------------------------
CHANNELS = [4, 8, 16]          # conv channel ladder
LINEARS_CFG = [32, 16]         # `linears` constructor arg
INPUT_CROP = 16
KERNEL_SIZE = 5
DILATION = 1
PADDING = KERNEL_SIZE // 2     # 2
STRIDE = 2
OUTPUT_PADDING = 1
NUM_NOTES = 128

LEAK = 0.2
LN_EPS = 1e-5

CONV_SIZES = [INPUT_CROP]
for _ in range(len(CHANNELS) - 1):
    _cs = (CONV_SIZES[-1] + 2 * PADDING - DILATION * (KERNEL_SIZE - 1) - 1) / STRIDE + 1
    CONV_SIZES.append(math.floor(_cs))
INTERMEDIATE = CONV_SIZES[-1] * CHANNELS[-1]

DECONV_SIZES = [CONV_SIZES[-1]]
for _ in range(len(CHANNELS) - 1):
    _dcs = (DECONV_SIZES[-1] - 1) * STRIDE - 2 * PADDING + DILATION * (KERNEL_SIZE - 1) \
           + OUTPUT_PADDING + 1
    DECONV_SIZES.append(_dcs)

LINEARS = [INTERMEDIATE] + LINEARS_CFG          # [64, 32, 16]
HEAD_SIZE = LINEARS[-2] // 2                    # 16
LATENT = LINEARS[-1]                            # 16
INSTR = [LINEARS[-1], 4, 8, 16, 32, 11]
DEC_LINEARS = list(LINEARS[::-1])
DEC_LINEARS[0] += NUM_NOTES                     # [144, 32, 64]
DEC_CHANNELS = CHANNELS[::-1]                   # [16, 8, 4]

# For this config the final crop (x[:, :, :input_crop]) is a no-op.
assert DECONV_SIZES[-1] == INPUT_CROP


def _round_up(x, m):
    return ((x + m - 1) // m) * m


# ----------------------------------------------------------------------------
# Packed parameter layouts (shared between init and kernel; all static)
# ----------------------------------------------------------------------------
DATA_LANES = 128                                # one lane-dense data slab [B, 128]
EPS_OFF = INPUT_CROP * CHANNELS[0]              # 64: eps lives after x_flat
NOISE_OFF = EPS_OFF + LATENT                    # 80
assert NOISE_OFF + LATENT <= DATA_LANES


def _build_weight_layout():
    specs = []
    for i in range(len(CHANNELS) - 1):
        in_f = DATA_LANES if i == 0 else CHANNELS[i] * CONV_SIZES[i]
        specs.append((f"enc_conv{i}", in_f, CHANNELS[i + 1] * CONV_SIZES[i + 1]))
    for i in range(len(LINEARS) - 2):
        specs.append((f"enc_lin{i}", LINEARS[i], LINEARS[i + 1]))
    specs.append(("regcla", LINEARS[-2], 2 * HEAD_SIZE))      # fused reg|cla heads
    specs.append(("meanvar", HEAD_SIZE, 2 * LATENT))          # fused mean|var heads
    specs.append(("note", HEAD_SIZE, NUM_NOTES))
    for i in range(len(INSTR) - 1):
        specs.append((f"inst{i}", INSTR[i], INSTR[i + 1]))
    specs.append(("dec_lin0_wz", LATENT, DEC_LINEARS[1]))     # z rows of dec_lin0
    specs.append(("dec_lin0_woh", NUM_NOTES, DEC_LINEARS[1])) # one-hot rows of dec_lin0
    for i in range(1, len(DEC_LINEARS) - 1):
        specs.append((f"dec_lin{i}", DEC_LINEARS[i], DEC_LINEARS[i + 1]))
    for i in range(len(DEC_CHANNELS) - 1):
        specs.append((f"dec_deconv{i}",
                      DEC_CHANNELS[i] * DECONV_SIZES[i],
                      DEC_CHANNELS[i + 1] * DECONV_SIZES[i + 1]))
    woff, off = {}, 0
    for name, in_f, out_f in specs:
        assert out_f <= 128
        woff[name] = (off, in_f, out_f)
        off += _round_up(in_f, 16)              # 16-row alignment (bf16 sublane pack)
    return specs, woff, _round_up(off, 16)


W_SPECS, WOFF, W_ROWS = _build_weight_layout()


def _build_vector_layout():
    specs = []
    for i in range(len(CHANNELS) - 1):
        n = CHANNELS[i + 1] * CONV_SIZES[i + 1]
        specs += [(f"enc_conv{i}_b", n), (f"enc_conv{i}_g", n), (f"enc_conv{i}_beta", n)]
    for i in range(len(LINEARS) - 2):
        n = LINEARS[i + 1]
        specs += [(f"enc_lin{i}_b", n), (f"enc_lin{i}_g", n), (f"enc_lin{i}_beta", n)]
    specs += [("regcla_b", 2 * HEAD_SIZE),
              ("reg_g", HEAD_SIZE), ("reg_beta", HEAD_SIZE),
              ("cla_g", HEAD_SIZE), ("cla_beta", HEAD_SIZE),
              ("meanvar_b", 2 * LATENT), ("note_b", NUM_NOTES)]
    for i in range(len(INSTR) - 2):
        n = INSTR[i + 1]
        specs += [(f"inst{i}_b", n), (f"inst{i}_g", n), (f"inst{i}_beta", n)]
    specs += [(f"inst{len(INSTR) - 2}_b", INSTR[-1])]
    specs += [("dec_lin0_b", DEC_LINEARS[1]), ("dec_lin0_g", DEC_LINEARS[1]),
              ("dec_lin0_beta", DEC_LINEARS[1])]
    for i in range(1, len(DEC_LINEARS) - 1):
        n = DEC_LINEARS[i + 1]
        specs += [(f"dec_lin{i}_b", n), (f"dec_lin{i}_g", n), (f"dec_lin{i}_beta", n)]
    for i in range(len(DEC_CHANNELS) - 1):
        n = DEC_CHANNELS[i + 1] * DECONV_SIZES[i + 1]
        specs += [(f"dec_deconv{i}_b", n), (f"dec_deconv{i}_g", n),
                  (f"dec_deconv{i}_beta", n)]
    vrow = {name: (r, n) for r, (name, n) in enumerate(specs)}
    return specs, vrow, _round_up(len(specs), 8)


V_SPECS, VROW, V_ROWS = _build_vector_layout()

# single lane-dense output slab layout [B, OUT_LANES]
NOTE_OFF = 0
OH_OFF = NUM_NOTES
RECON_SIZE = DEC_CHANNELS[-1] * DECONV_SIZES[-1]
RECON_OFF = OH_OFF + NUM_NOTES
MEAN_OFF = RECON_OFF + RECON_SIZE
VAR_OFF = MEAN_OFF + LATENT
CLS_OFF = VAR_OFF + LATENT
OUT_LANES = _round_up(CLS_OFF + INSTR[-1], 128)          # 384


# ----------------------------------------------------------------------------
# The fused Pallas kernel: entire forward pass, everything resident in VMEM
# ----------------------------------------------------------------------------
def _fused_forward_kernel(data_ref, w_ref, v_ref, out_ref):
    f32 = jnp.float32
    bf16 = jnp.bfloat16

    def w(name):                                 # static slice of the bf16 weight slab
        off, rin, rout = WOFF[name]
        return w_ref[off:off + rin, :rout]

    def v(name):                                 # static slice of the f32 vector slab
        row, n = VROW[name]
        return v_ref[row:row + 1, :n]            # [1, n] -> broadcasts over batch

    def lin(h, name):
        # bf16 operands on the MXU, f32 accumulate, f32 bias add.
        return (jnp.dot(h.astype(bf16), w(name), preferred_element_type=f32)
                + v(name + "_b"))

    def layer_norm(y, g, beta, act=True):
        # two-pass variance in f32 (elementwise math stays f32 for v5e parity)
        mu = jnp.mean(y, axis=-1, keepdims=True)
        d = y - mu
        var = jnp.mean(d * d, axis=-1, keepdims=True)
        y = d * jax.lax.rsqrt(var + LN_EPS) * g + beta
        if act:
            y = jnp.where(y >= 0.0, y, LEAK * y)          # LeakyReLU(0.2)
        return y

    def lin_ln(h, name, act=True):
        return layer_norm(lin(h, name), v(name + "_g"), v(name + "_beta"), act)

    data = data_ref[...]                                   # [B, 128] f32
    eps = data[:, EPS_OFF:EPS_OFF + LATENT]
    noise = data[:, NOISE_OFF:NOISE_OFF + LATENT]

    # ---------------- encoder ----------------
    # enc_conv0's dense matrix consumes the full data slab directly (crop +
    # swapaxes folded into its rows; eps/noise/pad rows are zero).
    h = data
    for i in range(len(CHANNELS) - 1):
        h = lin_ln(h, f"enc_conv{i}")            # conv as dense matmul + LN + act
        # TODO(synk): nn.Dropout implemented as inference-mode identity.
    for i in range(len(LINEARS) - 2):
        h = lin_ln(h, f"enc_lin{i}")

    # fused regression|classification heads, split before their LayerNorms
    y_rc = lin(h, "regcla")                                # [B, 2*HEAD_SIZE]
    x_reg = layer_norm(y_rc[:, :HEAD_SIZE], v("reg_g"), v("reg_beta"), True)
    x_cla = layer_norm(y_rc[:, HEAD_SIZE:], v("cla_g"), v("cla_beta"), True)

    # fused mean|var head + note head
    mv = lin(x_reg, "meanvar")                             # [B, 2*LATENT]
    mean = mv[:, :LATENT]
    logvar = mv[:, LATENT:]
    note = lin(x_cla, "note")                              # [B, NUM_NOTES]

    # instrument head (uses mean + 0.05 * gaussian noise)
    cls_head = mean + 0.05 * noise
    for i in range(len(INSTR) - 2):
        cls_head = lin_ln(cls_head, f"inst{i}")
    cls_head = lin(cls_head, f"inst{len(INSTR) - 2}")

    # ---------------- reparameterize + one-hot(argmax) ----------------
    z = mean + jnp.exp(0.5 * logvar) * eps

    n_notes = note.shape[-1]
    mx = jnp.max(note, axis=-1, keepdims=True)
    idx = jax.lax.broadcasted_iota(jnp.int32, note.shape, 1)
    cand = jnp.where(note == mx, idx, n_notes)             # first maximal index
    amin = jnp.min(cand, axis=-1, keepdims=True)
    one_hot = (idx == amin).astype(f32)

    # ---------------- decoder ----------------
    # dec_lin0 split into z-part / one-hot-part -> no in-kernel concat needed
    d = (jnp.dot(z.astype(bf16), w("dec_lin0_wz"), preferred_element_type=f32)
         + jnp.dot(one_hot.astype(bf16), w("dec_lin0_woh"), preferred_element_type=f32)
         + v("dec_lin0_b"))
    d = layer_norm(d, v("dec_lin0_g"), v("dec_lin0_beta"), True)
    for i in range(1, len(DEC_LINEARS) - 1):
        d = lin_ln(d, f"dec_lin{i}")
    for i in range(len(DEC_CHANNELS) - 1):
        d = lin_ln(d, f"dec_deconv{i}", act=(i < len(DEC_CHANNELS) - 2))
    # the last deconv matrix emits the NATURAL [L, C] flat layout directly
    # (output swapaxes folded into its columns; no-op crop).

    # ---------------- single lane-dense output slab ----------------
    out_ref[...] = jnp.zeros(out_ref.shape, f32)           # cover pad lanes
    out_ref[:, NOTE_OFF:NOTE_OFF + NUM_NOTES] = note       # full-128-lane store
    out_ref[:, OH_OFF:OH_OFF + NUM_NOTES] = one_hot        # full-128-lane store
    out_ref[:, RECON_OFF:RECON_OFF + RECON_SIZE] = d
    out_ref[:, MEAN_OFF:MEAN_OFF + LATENT] = mean
    out_ref[:, VAR_OFF:VAR_OFF + LATENT] = logvar
    out_ref[:, CLS_OFF:CLS_OFF + INSTR[-1]] = cls_head


def _vmem_spec():
    return pl.BlockSpec(memory_space=pltpu.MemorySpace.VMEM)


# ----------------------------------------------------------------------------
# Host-side lowering of conv / deconv weights to dense matrices
# ----------------------------------------------------------------------------
def _conv1d_first_matrix(w, l_in, l_out, stride, pad):
    # w: [C_out, C_in, K].  Rows are the NATURAL (time-major) flat layout of the
    # CROPPED input (row = t*C_in + c) -> folds the wrapper crop + swapaxes.
    # Columns stay channel-major (co*L_out + t) for the next encoder layer.
    c_out, c_in, k_sz = w.shape
    m = np.zeros((c_in * l_in, c_out * l_out), np.float32)
    for co in range(c_out):
        for t in range(l_out):
            for ci in range(c_in):
                for k in range(k_sz):
                    q = t * stride - pad + k
                    if 0 <= q < l_in:
                        m[q * c_in + ci, co * l_out + t] = w[co, ci, k]
    return m


def _conv1d_matrix(w, l_in, l_out, stride, pad):
    # w: [C_out, C_in, K]  ->  channel-major [C_in*L_in, C_out*L_out]
    c_out, c_in, k_sz = w.shape
    m = np.zeros((c_in * l_in, c_out * l_out), np.float32)
    for co in range(c_out):
        for t in range(l_out):
            for ci in range(c_in):
                for k in range(k_sz):
                    q = t * stride - pad + k
                    if 0 <= q < l_in:
                        m[ci * l_in + q, co * l_out + t] = w[co, ci, k]
    return m


def _convtr1d_matrix(w, l_in, l_out, stride, pad, natural_out=False):
    # w: [C_in, C_out, K]  ->  [C_in*L_in, C_out*L_out]
    # natural_out=True emits columns in natural [L, C] order (folds the output
    # swapaxes for the final deconv); bias/gamma/beta are 0/1/0 at init so the
    # matching permutation of the affine params is the identity.
    c_in, c_out, k_sz = w.shape
    m = np.zeros((c_in * l_in, c_out * l_out), np.float32)
    for ci in range(c_in):
        for j in range(l_in):
            for co in range(c_out):
                for k in range(k_sz):
                    t = j * stride - pad + k
                    if 0 <= t < l_out:
                        col = (t * c_out + co) if natural_out else (co * l_out + t)
                        m[ci * l_in + j, col] = w[ci, co, k]
    return m


# ----------------------------------------------------------------------------
# Parameter setup: build the two lane-dense slabs
# ----------------------------------------------------------------------------
def init_params(key):
    keys = iter(jax.random.split(key, 64))
    w_slab = np.zeros((W_ROWS, 128), np.float32)
    v_slab = np.zeros((V_ROWS, 128), np.float32)

    def xavier(shape, fan_in, fan_out):
        # torch.nn.init.xavier_normal_(..., gain=2) as used by the module
        std = 2.0 * math.sqrt(2.0 / (fan_in + fan_out))
        return np.asarray(std * jax.random.normal(next(keys), shape, dtype=jnp.float32))

    def torch_linear(in_f, out_f):
        return xavier((out_f, in_f), in_f, out_f).T        # torch [out,in] -> [in,out]

    def put_w(name, mat):
        off, rin, rout = WOFF[name]
        assert mat.shape[0] <= rin and mat.shape[1] == rout, name
        w_slab[off:off + mat.shape[0], :rout] = mat

    # LayerNorm gammas = 1 (all biases / betas stay 0).
    for name, n in V_SPECS:
        if name.endswith("_g"):
            v_slab[VROW[name][0], :n] = 1.0

    # encoder convs (dense matrices)
    w0 = xavier((CHANNELS[1], CHANNELS[0], KERNEL_SIZE),
                CHANNELS[0] * KERNEL_SIZE, CHANNELS[1] * KERNEL_SIZE)
    put_w("enc_conv0", _conv1d_first_matrix(w0, INPUT_CROP, CONV_SIZES[1], STRIDE, PADDING))
    for i in range(1, len(CHANNELS) - 1):
        wi = xavier((CHANNELS[i + 1], CHANNELS[i], KERNEL_SIZE),
                    CHANNELS[i] * KERNEL_SIZE, CHANNELS[i + 1] * KERNEL_SIZE)
        put_w(f"enc_conv{i}",
              _conv1d_matrix(wi, CONV_SIZES[i], CONV_SIZES[i + 1], STRIDE, PADDING))

    # encoder linears
    for i in range(len(LINEARS) - 2):
        put_w(f"enc_lin{i}", torch_linear(LINEARS[i], LINEARS[i + 1]))

    # fused regression|classification heads, fused mean|var head, note head
    put_w("regcla", np.concatenate([torch_linear(LINEARS[-2], HEAD_SIZE),
                                    torch_linear(LINEARS[-2], HEAD_SIZE)], axis=1))
    put_w("meanvar", np.concatenate([torch_linear(HEAD_SIZE, LATENT),
                                     torch_linear(HEAD_SIZE, LATENT)], axis=1))
    put_w("note", torch_linear(HEAD_SIZE, NUM_NOTES))

    # instrument head MLP
    for i in range(len(INSTR) - 1):
        put_w(f"inst{i}", torch_linear(INSTR[i], INSTR[i + 1]))

    # decoder linear 0 (split rows: z | one_hot) and remaining decoder linears
    w_dec0 = torch_linear(DEC_LINEARS[0], DEC_LINEARS[1])   # [LATENT+NUM_NOTES, 32]
    put_w("dec_lin0_wz", w_dec0[:LATENT, :])
    put_w("dec_lin0_woh", w_dec0[LATENT:, :])
    for i in range(1, len(DEC_LINEARS) - 1):
        put_w(f"dec_lin{i}", torch_linear(DEC_LINEARS[i], DEC_LINEARS[i + 1]))

    # decoder deconvs (dense matrices); the last one emits natural [L, C] layout
    for i in range(len(DEC_CHANNELS) - 1):
        cin, cout = DEC_CHANNELS[i], DEC_CHANNELS[i + 1]
        wt = xavier((cin, cout, KERNEL_SIZE), cout * KERNEL_SIZE, cin * KERNEL_SIZE)
        put_w(f"dec_deconv{i}",
              _convtr1d_matrix(wt, DECONV_SIZES[i], DECONV_SIZES[i + 1], STRIDE,
                               PADDING, natural_out=(i == len(DEC_CHANNELS) - 2)))

    return {"w": jnp.asarray(w_slab, dtype=jnp.bfloat16),   # bf16: MXU-native
            "v": jnp.asarray(v_slab, dtype=jnp.float32)}    # f32: elementwise params


# ----------------------------------------------------------------------------
# Forward pass: one fused pallas_call (mirrors forward with encoder_only=False)
# ----------------------------------------------------------------------------
def _cost_estimate(batch):
    flops = 2 * batch * sum(i * o for _, i, o in W_SPECS)
    transcend = batch * (LATENT + 64)            # exp in reparam + rsqrt per LN
    bytes_acc = (batch * DATA_LANES * 4 + batch * OUT_LANES * 4
                 + W_ROWS * 128 * 2 + V_ROWS * 128 * 4)
    return pl.CostEstimate(flops=flops, transcendentals=transcend,
                           bytes_accessed=bytes_acc)


def forward(params, x, key):
    B = x.shape[0]
    k_eps, k_noise = jax.random.split(key)
    eps = jax.random.normal(k_eps, (B, LATENT), jnp.float32)
    noise = jax.random.normal(k_noise, (B, LATENT), jnp.float32)

    # one lane-dense input slab: [ cropped x (natural layout) | eps | noise | 0 ]
    xf = x[:, :INPUT_CROP, :].reshape(B, INPUT_CROP * CHANNELS[0])
    pad = jnp.zeros((B, DATA_LANES - (NOISE_OFF + LATENT)), jnp.float32)
    data = jnp.concatenate([xf, eps, noise, pad], axis=-1)   # [B, 128]

    out = pl.pallas_call(
        _fused_forward_kernel,
        out_shape=jax.ShapeDtypeStruct((B, OUT_LANES), jnp.float32),
        in_specs=[_vmem_spec(), _vmem_spec(), _vmem_spec()],
        out_specs=_vmem_spec(),
        cost_estimate=_cost_estimate(B),
    )(data, params["w"], params["v"])

    note_cls = out[:, NOTE_OFF:NOTE_OFF + NUM_NOTES]
    one_hot = out[:, OH_OFF:OH_OFF + NUM_NOTES]
    recon = out[:, RECON_OFF:RECON_OFF + RECON_SIZE].reshape(
        B, INPUT_CROP, CHANNELS[0])                          # natural layout: pure view
    mean = out[:, MEAN_OFF:MEAN_OFF + LATENT]
    logvar = out[:, VAR_OFF:VAR_OFF + LATENT]
    cls_head = out[:, CLS_OFF:CLS_OFF + INSTR[-1]]
    return recon, mean, logvar, note_cls, one_hot, cls_head


# ----------------------------------------------------------------------------
if __name__ == "__main__":
    root = jax.random.PRNGKey(0)
    k_param, k_input, k_fwd = jax.random.split(root, 3)

    params = init_params(k_param)

    B, T, C_IN = 2, 20, CHANNELS[0]      # NOTE: B >= 8 recommended for MXU util
    x = jax.random.normal(k_input, (B, T, C_IN), dtype=jnp.float32)

    fwd = jax.jit(forward)
    out = fwd(params, x, k_fwd)
    out = jax.block_until_ready(out)

    recon, mean, logvar, note_cls, one_hot, cls_head = out
    assert recon.shape == (B, INPUT_CROP, C_IN)
    assert mean.shape == (B, LATENT)
    assert logvar.shape == (B, LATENT)
    assert note_cls.shape == (B, NUM_NOTES)
    assert one_hot.shape == (B, NUM_NOTES)
    assert cls_head.shape == (B, INSTR[-1])
    assert bool(jnp.all(jnp.isfinite(recon)))
    assert bool(jnp.all(jnp.sum(one_hot, axis=-1) == 1.0))
    print("KERNEL_OK")
</pallas_src>

<mosaic_0001>
module attributes {stable_mosaic.version = 11 : i64} {
  func.func @_fused_forward_kernel(%arg0: memref<2x128xf32, #tpu.memory_space<vmem>>, %arg1: memref<720x128xbf16, #tpu.memory_space<vmem>>, %arg2: memref<48x128xf32, #tpu.memory_space<vmem>>, %arg3: memref<2x384xf32, #tpu.memory_space<vmem>>) attributes {dimension_semantics = [], scalar_prefetch = 0 : i64, scratch_operands = 0 : i64, tpu.core_type = #tpu.core_type<tc>} {
    %c0 = arith.constant 0 : index
    %c0_0 = arith.constant 0 : index
    %0 = vector.load %arg0[%c0, %c0_0] : memref<2x128xf32, #tpu.memory_space<vmem>>, vector<2x128xf32>
    %1 = vector.extract_strided_slice %0 {offsets = [0, 64], sizes = [2, 16], strides = [1, 1]} : vector<2x128xf32> to vector<2x16xf32>
    %2 = vector.extract_strided_slice %0 {offsets = [0, 80], sizes = [2, 16], strides = [1, 1]} : vector<2x128xf32> to vector<2x16xf32>
    %3 = arith.truncf %0 : vector<2x128xf32> to vector<2x128xbf16>
    %c0_1 = arith.constant 0 : index
    %c0_2 = arith.constant 0 : index
    %4 = vector.load %arg1[%c0_1, %c0_2] : memref<720x128xbf16, #tpu.memory_space<vmem>>, vector<128x64xbf16>
    %cst = arith.constant dense<0.000000e+00> : vector<2x64xf32>
    %5 = tpu.matmul %3, %4, %cst {dimension_numbers = #tpu.dot_dimension_numbers<[1], [0], [0], [1], [0, 0, 1, 1], [], []>} : vector<2x128xbf16>, vector<128x64xbf16>, vector<2x64xf32> -> vector<2x64xf32>
    %c0_3 = arith.constant 0 : index
    %c0_4 = arith.constant 0 : index
    %6 = vector.load %arg2[%c0_3, %c0_4] : memref<48x128xf32, #tpu.memory_space<vmem>>, vector<1x64xf32>
    %7 = vector.broadcast %6 : vector<1x64xf32> to vector<2x64xf32>
    %8 = arith.addf %5, %7 : vector<2x64xf32>
    %c1 = arith.constant 1 : index
    %c0_5 = arith.constant 0 : index
    %9 = vector.load %arg2[%c1, %c0_5] : memref<48x128xf32, #tpu.memory_space<vmem>>, vector<1x64xf32>
    %c2 = arith.constant 2 : index
    %c0_6 = arith.constant 0 : index
    %10 = vector.load %arg2[%c2, %c0_6] : memref<48x128xf32, #tpu.memory_space<vmem>>, vector<1x64xf32>
    %cst_7 = arith.constant dense<0.000000e+00> : vector<2xf32>
    %11 = vector.multi_reduction <add>, %8, %cst_7 [1] : vector<2x64xf32> to vector<2xf32>
    %12 = vector.shape_cast %11 : vector<2xf32> to vector<2x1xf32>
    %cst_8 = arith.constant 6.400000e+01 : f32
    %13 = vector.broadcast %cst_8 : f32 to vector<2x1xf32>
    %14 = arith.divf %12, %13 : vector<2x1xf32>
    %15 = vector.broadcast %14 : vector<2x1xf32> to vector<2x64xf32>
    %16 = arith.subf %8, %15 : vector<2x64xf32>
    %17 = arith.mulf %16, %16 : vector<2x64xf32>
    %cst_9 = arith.constant dense<0.000000e+00> : vector<2xf32>
    %18 = vector.multi_reduction <add>, %17, %cst_9 [1] : vector<2x64xf32> to vector<2xf32>
    %19 = vector.shape_cast %18 : vector<2xf32> to vector<2x1xf32>
    %cst_10 = arith.constant 6.400000e+01 : f32
    %20 = vector.broadcast %cst_10 : f32 to vector<2x1xf32>
    %21 = arith.divf %19, %20 : vector<2x1xf32>
    %cst_11 = arith.constant 9.99999974E-6 : f32
    %22 = vector.broadcast %cst_11 : f32 to vector<2x1xf32>
    %23 = arith.addf %21, %22 : vector<2x1xf32>
    %24 = math.rsqrt %23 : vector<2x1xf32>
    %25 = vector.broadcast %24 : vector<2x1xf32> to vector<2x64xf32>
    %26 = arith.mulf %16, %25 : vector<2x64xf32>
    %27 = vector.broadcast %9 : vector<1x64xf32> to vector<2x64xf32>
    %28 = arith.mulf %26, %27 : vector<2x64xf32>
    %29 = vector.broadcast %10 : vector<1x64xf32> to vector<2x64xf32>
    %30 = arith.addf %28, %29 : vector<2x64xf32>
    %cst_12 = arith.constant 0.000000e+00 : f32
    %31 = vector.broadcast %cst_12 : f32 to vector<2x64xf32>
    %32 = arith.cmpf oge, %30, %31 : vector<2x64xf32>
    %cst_13 = arith.constant 2.000000e-01 : f32
    %33 = vector.broadcast %cst_13 : f32 to vector<2x64xf32>
    %34 = arith.mulf %33, %30 : vector<2x64xf32>
    %35 = arith.select %32, %30, %34 : vector<2x64xi1>, vector<2x64xf32>
    %36 = arith.truncf %35 : vector<2x64xf32> to vector<2x64xbf16>
    %c128 = arith.constant 128 : index
    %c0_14 = arith.constant 0 : index
    %37 = vector.load %arg1[%c128, %c0_14] : memref<720x128xbf16, #tpu.memory_space<vmem>>, vector<64x64xbf16>
    %cst_15 = arith.constant dense<0.000000e+00> : vector<2x64xf32>
    %38 = tpu.matmul %36, %37, %cst_15 {dimension_numbers = #tpu.dot_dimension_numbers<[1], [0], [0], [1], [0, 0, 1, 1], [], []>} : vector<2x64xbf16>, vector<64x64xbf16>, vector<2x64xf32> -> vector<2x64xf32>
    %c3 = arith.constant 3 : index
    %c0_16 = arith.constant 0 : index
    %39 = vector.load %arg2[%c3, %c0_16] : memref<48x128xf32, #tpu.memory_space<vmem>>, vector<1x64xf32>
    %40 = vector.broadcast %39 : vector<1x64xf32> to vector<2x64xf32>
    %41 = arith.addf %38, %40 : vector<2x64xf32>
    %c4 = arith.constant 4 : index
    %c0_17 = arith.constant 0 : index
    %42 = vector.load %arg2[%c4, %c0_17] : memref<48x128xf32, #tpu.memory_space<vmem>>, vector<1x64xf32>
    %c5 = arith.constant 5 : index
    %c0_18 = arith.constant 0 : index
    %43 = vector.load %arg2[%c5, %c0_18] : memref<48x128xf32, #tpu.memory_space<vmem>>, vector<1x64xf32>
    %cst_19 = arith.constant dense<0.000000e+00> : vector<2xf32>
    %44 = vector.multi_reduction <add>, %41, %cst_19 [1] : vector<2x64xf32> to vector<2xf32>
    %45 = vector.shape_cast %44 : vector<2xf32> to vector<2x1xf32>
    %cst_20 = arith.constant 6.400000e+01 : f32
    %46 = vector.broadcast %cst_20 : f32 to vector<2x1xf32>
    %47 = arith.divf %45, %46 : vector<2x1xf32>
    %48 = vector.broadcast %47 : vector<2x1xf32> to vector<2x64xf32>
    %49 = arith.subf %41, %48 : vector<2x64xf32>
    %50 = arith.mulf %49, %49 : vector<2x64xf32>
    %cst_21 = arith.constant dense<0.000000e+00> : vector<2xf32>
    %51 = vector.multi_reduction <add>, %50, %cst_21 [1] : vector<2x64xf32> to vector<2xf32>
    %52 = vector.shape_cast %51 : vector<2xf32> to vector<2x1xf32>
    %cst_22 = arith.constant 6.400000e+01 : f32
    %53 = vector.broadcast %cst_22 : f32 to vector<2x1xf32>
    %54 = arith.divf %52, %53 : vector<2x1xf32>
    %cst_23 = arith.constant 9.99999974E-6 : f32
    %55 = vector.broadcast %cst_23 : f32 to vector<2x1xf32>
    %56 = arith.addf %54, %55 : vector<2x1xf32>
    %57 = math.rsqrt %56 : vector<2x1xf32>
    %58 = vector.broadcast %57 : vector<2x1xf32> to vector<2x64xf32>
    %59 = arith.mulf %49, %58 : vector<2x64xf32>
    %60 = vector.broadcast %42 : vector<1x64xf32> to vector<2x64xf32>
    %61 = arith.mulf %59, %60 : vector<2x64xf32>
    %62 = vector.broadcast %43 : vector<1x64xf32> to vector<2x64xf32>
    %63 = arith.addf %61, %62 : vector<2x64xf32>
    %cst_24 = arith.constant 0.000000e+00 : f32
    %64 = vector.broadcast %cst_24 : f32 to vector<2x64xf32>
    %65 = arith.cmpf oge, %63, %64 : vector<2x64xf32>
    %cst_25 = arith.constant 2.000000e-01 : f32
    %66 = vector.broadcast %cst_25 : f32 to vector<2x64xf32>
    %67 = arith.mulf %66, %63 : vector<2x64xf32>
    %68 = arith.select %65, %63, %67 : vector<2x64xi1>, vector<2x64xf32>
    %69 = arith.truncf %68 : vector<2x64xf32> to vector<2x64xbf16>
    %c192 = arith.constant 192 : index
    %c0_26 = arith.constant 0 : index
    %70 = vector.load %arg1[%c192, %c0_26] : memref<720x128xbf16, #tpu.memory_space<vmem>>, vector<64x32xbf16>
    %cst_27 = arith.constant dense<0.000000e+00> : vector<2x32xf32>
    %71 = tpu.matmul %69, %70, %cst_27 {dimension_numbers = #tpu.dot_dimension_numbers<[1], [0], [0], [1], [0, 0, 1, 1], [], []>} : vector<2x64xbf16>, vector<64x32xbf16>, vector<2x32xf32> -> vector<2x32xf32>
    %c6 = arith.constant 6 : index
    %c0_28 = arith.constant 0 : index
    %72 = vector.load %arg2[%c6, %c0_28] : memref<48x128xf32, #tpu.memory_space<vmem>>, vector<1x32xf32>
    %73 = vector.broadcast %72 : vector<1x32xf32> to vector<2x32xf32>
    %74 = arith.addf %71, %73 : vector<2x32xf32>
    %c7 = arith.constant 7 : index
    %c0_29 = arith.constant 0 : index
    %75 = vector.load %arg2[%c7, %c0_29] : memref<48x128xf32, #tpu.memory_space<vmem>>, vector<1x32xf32>
    %c8 = arith.constant 8 : index
    %c0_30 = arith.constant 0 : index
    %76 = vector.load %arg2[%c8, %c0_30] : memref<48x128xf32, #tpu.memory_space<vmem>>, vector<1x32xf32>
    %cst_31 = arith.constant dense<0.000000e+00> : vector<2xf32>
    %77 = vector.multi_reduction <add>, %74, %cst_31 [1] : vector<2x32xf32> to vector<2xf32>
    %78 = vector.shape_cast %77 : vector<2xf32> to vector<2x1xf32>
    %cst_32 = arith.constant 3.200000e+01 : f32
    %79 = vector.broadcast %cst_32 : f32 to vector<2x1xf32>
    %80 = arith.divf %78, %79 : vector<2x1xf32>
    %81 = vector.broadcast %80 : vector<2x1xf32> to vector<2x32xf32>
    %82 = arith.subf %74, %81 : vector<2x32xf32>
    %83 = arith.mulf %82, %82 : vector<2x32xf32>
    %cst_33 = arith.constant dense<0.000000e+00> : vector<2xf32>
    %84 = vector.multi_reduction <add>, %83, %cst_33 [1] : vector<2x32xf32> to vector<2xf32>
    %85 = vector.shape_cast %84 : vector<2xf32> to vector<2x1xf32>
    %cst_34 = arith.constant 3.200000e+01 : f32
    %86 = vector.broadcast %cst_34 : f32 to vector<2x1xf32>
    %87 = arith.divf %85, %86 : vector<2x1xf32>
    %cst_35 = arith.constant 9.99999974E-6 : f32
    %88 = vector.broadcast %cst_35 : f32 to vector<2x1xf32>
    %89 = arith.addf %87, %88 : vector<2x1xf32>
    %90 = math.rsqrt %89 : vector<2x1xf32>
    %91 = vector.broadcast %90 : vector<2x1xf32> to vector<2x32xf32>
    %92 = arith.mulf %82, %91 : vector<2x32xf32>
    %93 = vector.broadcast %75 : vector<1x32xf32> to vector<2x32xf32>
    %94 = arith.mulf %92, %93 : vector<2x32xf32>
    %95 = vector.broadcast %76 : vector<1x32xf32> to vector<2x32xf32>
    %96 = arith.addf %94, %95 : vector<2x32xf32>
    %cst_36 = arith.constant 0.000000e+00 : f32
    %97 = vector.broadcast %cst_36 : f32 to vector<2x32xf32>
    %98 = arith.cmpf oge, %96, %97 : vector<2x32xf32>
    %cst_37 = arith.constant 2.000000e-01 : f32
    %99 = vector.broadcast %cst_37 : f32 to vector<2x32xf32>
    %100 = arith.mulf %99, %96 : vector<2x32xf32>
    %101 = arith.select %98, %96, %100 : vector<2x32xi1>, vector<2x32xf32>
    %102 = arith.truncf %101 : vector<2x32xf32> to vector<2x32xbf16>
    %c256 = arith.constant 256 : index
    %c0_38 = arith.constant 0 : index
    %103 = vector.load %arg1[%c256, %c0_38] : memref<720x128xbf16, #tpu.memory_space<vmem>>, vector<32x32xbf16>
    %cst_39 = arith.constant dense<0.000000e+00> : vector<2x32xf32>
    %104 = tpu.matmul %102, %103, %cst_39 {dimension_numbers = #tpu.dot_dimension_numbers<[1], [0], [0], [1], [0, 0, 1, 1], [], []>} : vector<2x32xbf16>, vector<32x32xbf16>, vector<2x32xf32> -> vector<2x32xf32>
    %c9 = arith.constant 9 : index
    %c0_40 = arith.constant 0 : index
    %105 = vector.load %arg2[%c9, %c0_40] : memref<48x128xf32, #tpu.memory_space<vmem>>, vector<1x32xf32>
    %106 = vector.broadcast %105 : vector<1x32xf32> to vector<2x32xf32>
    %107 = arith.addf %104, %106 : vector<2x32xf32>
    %108 = vector.extract_strided_slice %107 {offsets = [0, 0], sizes = [2, 16], strides = [1, 1]} : vector<2x32xf32> to vector<2x16xf32>
    %c10 = arith.constant 10 : index
    %c0_41 = arith.constant 0 : index
    %109 = vector.load %arg2[%c10, %c0_41] : memref<48x128xf32, #tpu.memory_space<vmem>>, vector<1x16xf32>
    %c11 = arith.constant 11 : index
    %c0_42 = arith.constant 0 : index
    %110 = vector.load %arg2[%c11, %c0_42] : memref<48x128xf32, #tpu.memory_space<vmem>>, vector<1x16xf32>
    %cst_43 = arith.constant dense<0.000000e+00> : vector<2xf32>
    %111 = vector.multi_reduction <add>, %108, %cst_43 [1] : vector<2x16xf32> to vector<2xf32>
    %112 = vector.shape_cast %111 : vector<2xf32> to vector<2x1xf32>
    %cst_44 = arith.constant 1.600000e+01 : f32
    %113 = vector.broadcast %cst_44 : f32 to vector<2x1xf32>
    %114 = arith.divf %112, %113 : vector<2x1xf32>
    %115 = vector.broadcast %114 : vector<2x1xf32> to vector<2x16xf32>
    %116 = arith.subf %108, %115 : vector<2x16xf32>
    %117 = arith.mulf %116, %116 : vector<2x16xf32>
    %cst_45 = arith.constant dense<0.000000e+00> : vector<2xf32>
    %118 = vector.multi_reduction <add>, %117, %cst_45 [1] : vector<2x16xf32> to vector<2xf32>
    %119 = vector.shape_cast %118 : vector<2xf32> to vector<2x1xf32>
    %cst_46 = arith.constant 1.600000e+01 : f32
    %120 = vector.broadcast %cst_46 : f32 to vector<2x1xf32>
    %121 = arith.divf %119, %120 : vector<2x1xf32>
    %cst_47 = arith.constant 9.99999974E-6 : f32
    %122 = vector.broadcast %cst_47 : f32 to vector<2x1xf32>
    %123 = arith.addf %121, %122 : vector<2x1xf32>
    %124 = math.rsqrt %123 : vector<2x1xf32>
    %125 = vector.broadcast %124 : vector<2x1xf32> to vector<2x16xf32>
    %126 = arith.mulf %116, %125 : vector<2x16xf32>
    %127 = vector.broadcast %109 : vector<1x16xf32> to vector<2x16xf32>
    %128 = arith.mulf %126, %127 : vector<2x16xf32>
    %129 = vector.broadcast %110 : vector<1x16xf32> to vector<2x16xf32>
    %130 = arith.addf %128, %129 : vector<2x16xf32>
    %cst_48 = arith.constant 0.000000e+00 : f32
    %131 = vector.broadcast %cst_48 : f32 to vector<2x16xf32>
    %132 = arith.cmpf oge, %130, %131 : vector<2x16xf32>
    %cst_49 = arith.constant 2.000000e-01 : f32
    %133 = vector.broadcast %cst_49 : f32 to vector<2x16xf32>
    %134 = arith.mulf %133, %130 : vector<2x16xf32>
    %135 = arith.select %132, %130, %134 : vector<2x16xi1>, vector<2x16xf32>
    %136 = vector.extract_strided_slice %107 {offsets = [0, 16], sizes = [2, 16], strides = [1, 1]} : vector<2x32xf32> to vector<2x16xf32>
    %c12 = arith.constant 12 : index
    %c0_50 = arith.constant 0 : index
    %137 = vector.load %arg2[%c12, %c0_50] : memref<48x128xf32, #tpu.memory_space<vmem>>, vector<1x16xf32>
    %c13 = arith.constant 13 : index
    %c0_51 = arith.constant 0 : index
    %138 = vector.load %arg2[%c13, %c0_51] : memref<48x128xf32, #tpu.memory_space<vmem>>, vector<1x16xf32>
    %cst_52 = arith.constant dense<0.000000e+00> : vector<2xf32>
    %139 = vector.multi_reduction <add>, %136, %cst_52 [1] : vector<2x16xf32> to vector<2xf32>
    %140 = vector.shape_cast %139 : vector<2xf32> to vector<2x1xf32>
    %cst_53 = arith.constant 1.600000e+01 : f32
    %141 = vector.broadcast %cst_53 : f32 to vector<2x1xf32>
    %142 = arith.divf %140, %141 : vector<2x1xf32>
    %143 = vector.broadcast %142 : vector<2x1xf32> to vector<2x16xf32>
    %144 = arith.subf %136, %143 : vector<2x16xf32>
    %145 = arith.mulf %144, %144 : vector<2x16xf32>
    %cst_54 = arith.constant dense<0.000000e+00> : vector<2xf32>
    %146 = vector.multi_reduction <add>, %145, %cst_54 [1] : vector<2x16xf32> to vector<2xf32>
    %147 = vector.shape_cast %146 : vector<2xf32> to vector<2x1xf32>
    %cst_55 = arith.constant 1.600000e+01 : f32
    %148 = vector.broadcast %cst_55 : f32 to vector<2x1xf32>
    %149 = arith.divf %147, %148 : vector<2x1xf32>
    %cst_56 = arith.constant 9.99999974E-6 : f32
    %150 = vector.broadcast %cst_56 : f32 to vector<2x1xf32>
    %151 = arith.addf %149, %150 : vector<2x1xf32>
    %152 = math.rsqrt %151 : vector<2x1xf32>
    %153 = vector.broadcast %152 : vector<2x1xf32> to vector<2x16xf32>
    %154 = arith.mulf %144, %153 : vector<2x16xf32>
    %155 = vector.broadcast %137 : vector<1x16xf32> to vector<2x16xf32>
    %156 = arith.mulf %154, %155 : vector<2x16xf32>
    %157 = vector.broadcast %138 : vector<1x16xf32> to vector<2x16xf32>
    %158 = arith.addf %156, %157 : vector<2x16xf32>
    %cst_57 = arith.constant 0.000000e+00 : f32
    %159 = vector.broadcast %cst_57 : f32 to vector<2x16xf32>
    %160 = arith.cmpf oge, %158, %159 : vector<2x16xf32>
    %cst_58 = arith.constant 2.000000e-01 : f32
    %161 = vector.broadcast %cst_58 : f32 to vector<2x16xf32>
    %162 = arith.mulf %161, %158 : vector<2x16xf32>
    %163 = arith.select %160, %158, %162 : vector<2x16xi1>, vector<2x16xf32>
    %164 = arith.truncf %135 : vector<2x16xf32> to vector<2x16xbf16>
    %c288 = arith.constant 288 : index
    %c0_59 = arith.constant 0 : index
    %165 = vector.load %arg1[%c288, %c0_59] : memref<720x128xbf16, #tpu.memory_space<vmem>>, vector<16x32xbf16>
    %cst_60 = arith.constant dense<0.000000e+00> : vector<2x32xf32>
    %166 = tpu.matmul %164, %165, %cst_60 {dimension_numbers = #tpu.dot_dimension_numbers<[1], [0], [0], [1], [0, 0, 1, 1], [], []>} : vector<2x16xbf16>, vector<16x32xbf16>, vector<2x32xf32> -> vector<2x32xf32>
    %c14 = arith.constant 14 : index
    %c0_61 = arith.constant 0 : index
    %167 = vector.load %arg2[%c14, %c0_61] : memref<48x128xf32, #tpu.memory_space<vmem>>, vector<1x32xf32>
    %168 = vector.broadcast %167 : vector<1x32xf32> to vector<2x32xf32>
    %169 = arith.addf %166, %168 : vector<2x32xf32>
    %170 = vector.extract_strided_slice %169 {offsets = [0, 0], sizes = [2, 16], strides = [1, 1]} : vector<2x32xf32> to vector<2x16xf32>
    %171 = vector.extract_strided_slice %169 {offsets = [0, 16], sizes = [2, 16], strides = [1, 1]} : vector<2x32xf32> to vector<2x16xf32>
    %172 = arith.truncf %163 : vector<2x16xf32> to vector<2x16xbf16>
    %c304 = arith.constant 304 : index
    %c0_62 = arith.constant 0 : index
    %173 = vector.load %arg1[%c304, %c0_62] : memref<720x128xbf16, #tpu.memory_space<vmem>>, vector<16x128xbf16>
    %cst_63 = arith.constant dense<0.000000e+00> : vector<2x128xf32>
    %174 = tpu.matmul %172, %173, %cst_63 {dimension_numbers = #tpu.dot_dimension_numbers<[1], [0], [0], [1], [0, 0, 1, 1], [], []>} : vector<2x16xbf16>, vector<16x128xbf16>, vector<2x128xf32> -> vector<2x128xf32>
    %c15 = arith.constant 15 : index
    %c0_64 = arith.constant 0 : index
    %175 = vector.load %arg2[%c15, %c0_64] : memref<48x128xf32, #tpu.memory_space<vmem>>, vector<1x128xf32>
    %176 = vector.broadcast %175 : vector<1x128xf32> to vector<2x128xf32>
    %177 = arith.addf %174, %176 : vector<2x128xf32>
    %cst_65 = arith.constant 5.000000e-02 : f32
    %178 = vector.broadcast %cst_65 : f32 to vector<2x16xf32>
    %179 = arith.mulf %178, %2 : vector<2x16xf32>
    %180 = arith.addf %170, %179 : vector<2x16xf32>
    %181 = arith.truncf %180 : vector<2x16xf32> to vector<2x16xbf16>
    %c320 = arith.constant 320 : index
    %c0_66 = arith.constant 0 : index
    %182 = vector.load %arg1[%c320, %c0_66] : memref<720x128xbf16, #tpu.memory_space<vmem>>, vector<16x4xbf16>
    %cst_67 = arith.constant dense<0.000000e+00> : vector<2x4xf32>
    %183 = tpu.matmul %181, %182, %cst_67 {dimension_numbers = #tpu.dot_dimension_numbers<[1], [0], [0], [1], [0, 0, 1, 1], [], []>} : vector<2x16xbf16>, vector<16x4xbf16>, vector<2x4xf32> -> vector<2x4xf32>
    %c16 = arith.constant 16 : index
    %c0_68 = arith.constant 0 : index
    %184 = vector.load %arg2[%c16, %c0_68] : memref<48x128xf32, #tpu.memory_space<vmem>>, vector<1x4xf32>
    %185 = vector.broadcast %184 : vector<1x4xf32> to vector<2x4xf32>
    %186 = arith.addf %183, %185 : vector<2x4xf32>
    %c17 = arith.constant 17 : index
    %c0_69 = arith.constant 0 : index
    %187 = vector.load %arg2[%c17, %c0_69] : memref<48x128xf32, #tpu.memory_space<vmem>>, vector<1x4xf32>
    %c18 = arith.constant 18 : index
    %c0_70 = arith.constant 0 : index
    %188 = vector.load %arg2[%c18, %c0_70] : memref<48x128xf32, #tpu.memory_space<vmem>>, vector<1x4xf32>
    %cst_71 = arith.constant dense<0.000000e+00> : vector<2xf32>
    %189 = vector.multi_reduction <add>, %186, %cst_71 [1] : vector<2x4xf32> to vector<2xf32>
    %190 = vector.shape_cast %189 : vector<2xf32> to vector<2x1xf32>
    %cst_72 = arith.constant 4.000000e+00 : f32
    %191 = vector.broadcast %cst_72 : f32 to vector<2x1xf32>
    %192 = arith.divf %190, %191 : vector<2x1xf32>
    %193 = vector.broadcast %192 : vector<2x1xf32> to vector<2x4xf32>
    %194 = arith.subf %186, %193 : vector<2x4xf32>
    %195 = arith.mulf %194, %194 : vector<2x4xf32>
    %cst_73 = arith.constant dense<0.000000e+00> : vector<2xf32>
    %196 = vector.multi_reduction <add>, %195, %cst_73 [1] : vector<2x4xf32> to vector<2xf32>
    %197 = vector.shape_cast %196 : vector<2xf32> to vector<2x1xf32>
    %cst_74 = arith.constant 4.000000e+00 : f32
    %198 = vector.broadcast %cst_74 : f32 to vector<2x1xf32>
    %199 = arith.divf %197, %198 : vector<2x1xf32>
    %cst_75 = arith.constant 9.99999974E-6 : f32
    %200 = vector.broadcast %cst_75 : f32 to vector<2x1xf32>
    %201 = arith.addf %199, %200 : vector<2x1xf32>
    %202 = math.rsqrt %201 : vector<2x1xf32>
    %203 = vector.broadcast %202 : vector<2x1xf32> to vector<2x4xf32>
    %204 = arith.mulf %194, %203 : vector<2x4xf32>
    %205 = vector.broadcast %187 : vector<1x4xf32> to vector<2x4xf32>
    %206 = arith.mulf %204, %205 : vector<2x4xf32>
    %207 = vector.broadcast %188 : vector<1x4xf32> to vector<2x4xf32>
    %208 = arith.addf %206, %207 : vector<2x4xf32>
    %cst_76 = arith.constant 0.000000e+00 : f32
    %209 = vector.broadcast %cst_76 : f32 to vector<2x4xf32>
    %210 = arith.cmpf oge, %208, %209 : vector<2x4xf32>
    %cst_77 = arith.constant 2.000000e-01 : f32
    %211 = vector.broadcast %cst_77 : f32 to vector<2x4xf32>
    %212 = arith.mulf %211, %208 : vector<2x4xf32>
    %213 = arith.select %210, %208, %212 : vector<2x4xi1>, vector<2x4xf32>
    %214 = arith.truncf %213 : vector<2x4xf32> to vector<2x4xbf16>
    %c336 = arith.constant 336 : index
    %c0_78 = arith.constant 0 : index
    %215 = vector.load %arg1[%c336, %c0_78] : memref<720x128xbf16, #tpu.memory_space<vmem>>, vector<4x8xbf16>
    %cst_79 = arith.constant dense<0.000000e+00> : vector<2x8xf32>
    %216 = tpu.matmul %214, %215, %cst_79 {dimension_numbers = #tpu.dot_dimension_numbers<[1], [0], [0], [1], [0, 0, 1, 1], [], []>} : vector<2x4xbf16>, vector<4x8xbf16>, vector<2x8xf32> -> vector<2x8xf32>
    %c19 = arith.constant 19 : index
    %c0_80 = arith.constant 0 : index
    %217 = vector.load %arg2[%c19, %c0_80] : memref<48x128xf32, #tpu.memory_space<vmem>>, vector<1x8xf32>
    %218 = vector.broadcast %217 : vector<1x8xf32> to vector<2x8xf32>
    %219 = arith.addf %216, %218 : vector<2x8xf32>
    %c20 = arith.constant 20 : index
    %c0_81 = arith.constant 0 : index
    %220 = vector.load %arg2[%c20, %c0_81] : memref<48x128xf32, #tpu.memory_space<vmem>>, vector<1x8xf32>
    %c21 = arith.constant 21 : index
    %c0_82 = arith.constant 0 : index
    %221 = vector.load %arg2[%c21, %c0_82] : memref<48x128xf32, #tpu.memory_space<vmem>>, vector<1x8xf32>
    %cst_83 = arith.constant dense<0.000000e+00> : vector<2xf32>
    %222 = vector.multi_reduction <add>, %219, %cst_83 [1] : vector<2x8xf32> to vector<2xf32>
    %223 = vector.shape_cast %222 : vector<2xf32> to vector<2x1xf32>
    %cst_84 = arith.constant 8.000000e+00 : f32
    %224 = vector.broadcast %cst_84 : f32 to vector<2x1xf32>
    %225 = arith.divf %223, %224 : vector<2x1xf32>
    %226 = vector.broadcast %225 : vector<2x1xf32> to vector<2x8xf32>
    %227 = arith.subf %219, %226 : vector<2x8xf32>
    %228 = arith.mulf %227, %227 : vector<2x8xf32>
    %cst_85 = arith.constant dense<0.000000e+00> : vector<2xf32>
    %229 = vector.multi_reduction <add>, %228, %cst_85 [1] : vector<2x8xf32> to vector<2xf32>
    %230 = vector.shape_cast %229 : vector<2xf32> to vector<2x1xf32>
    %cst_86 = arith.constant 8.000000e+00 : f32
    %231 = vector.broadcast %cst_86 : f32 to vector<2x1xf32>
    %232 = arith.divf %230, %231 : vector<2x1xf32>
    %cst_87 = arith.constant 9.99999974E-6 : f32
    %233 = vector.broadcast %cst_87 : f32 to vector<2x1xf32>
    %234 = arith.addf %232, %233 : vector<2x1xf32>
    %235 = math.rsqrt %234 : vector<2x1xf32>
    %236 = vector.broadcast %235 : vector<2x1xf32> to vector<2x8xf32>
    %237 = arith.mulf %227, %236 : vector<2x8xf32>
    %238 = vector.broadcast %220 : vector<1x8xf32> to vector<2x8xf32>
    %239 = arith.mulf %237, %238 : vector<2x8xf32>
    %240 = vector.broadcast %221 : vector<1x8xf32> to vector<2x8xf32>
    %241 = arith.addf %239, %240 : vector<2x8xf32>
    %cst_88 = arith.constant 0.000000e+00 : f32
    %242 = vector.broadcast %cst_88 : f32 to vector<2x8xf32>
    %243 = arith.cmpf oge, %241, %242 : vector<2x8xf32>
    %cst_89 = arith.constant 2.000000e-01 : f32
    %244 = vector.broadcast %cst_89 : f32 to vector<2x8xf32>
    %245 = arith.mulf %244, %241 : vector<2x8xf32>
    %246 = arith.select %243, %241, %245 : vector<2x8xi1>, vector<2x8xf32>
    %247 = arith.truncf %246 : vector<2x8xf32> to vector<2x8xbf16>
    %c352 = arith.constant 352 : index
    %c0_90 = arith.constant 0 : index
    %248 = vector.load %arg1[%c352, %c0_90] : memref<720x128xbf16, #tpu.memory_space<vmem>>, vector<8x16xbf16>
    %cst_91 = arith.constant dense<0.000000e+00> : vector<2x16xf32>
    %249 = tpu.matmul %247, %248, %cst_91 {dimension_numbers = #tpu.dot_dimension_numbers<[1], [0], [0], [1], [0, 0, 1, 1], [], []>} : vector<2x8xbf16>, vector<8x16xbf16>, vector<2x16xf32> -> vector<2x16xf32>
    %c22 = arith.constant 22 : index
    %c0_92 = arith.constant 0 : index
    %250 = vector.load %arg2[%c22, %c0_92] : memref<48x128xf32, #tpu.memory_space<vmem>>, vector<1x16xf32>
    %251 = vector.broadcast %250 : vector<1x16xf32> to vector<2x16xf32>
    %252 = arith.addf %249, %251 : vector<2x16xf32>
    %c23 = arith.constant 23 : index
    %c0_93 = arith.constant 0 : index
    %253 = vector.load %arg2[%c23, %c0_93] : memref<48x128xf32, #tpu.memory_space<vmem>>, vector<1x16xf32>
    %c24 = arith.constant 24 : index
    %c0_94 = arith.constant 0 : index
    %254 = vector.load %arg2[%c24, %c0_94] : memref<48x128xf32, #tpu.memory_space<vmem>>, vector<1x16xf32>
    %cst_95 = arith.constant dense<0.000000e+00> : vector<2xf32>
    %255 = vector.multi_reduction <add>, %252, %cst_95 [1] : vector<2x16xf32> to vector<2xf32>
    %256 = vector.shape_cast %255 : vector<2xf32> to vector<2x1xf32>
    %cst_96 = arith.constant 1.600000e+01 : f32
    %257 = vector.broadcast %cst_96 : f32 to vector<2x1xf32>
    %258 = arith.divf %256, %257 : vector<2x1xf32>
    %259 = vector.broadcast %258 : vector<2x1xf32> to vector<2x16xf32>
    %260 = arith.subf %252, %259 : vector<2x16xf32>
    %261 = arith.mulf %260, %260 : vector<2x16xf32>
    %cst_97 = arith.constant dense<0.000000e+00> : vector<2xf32>
    %262 = vector.multi_reduction <add>, %261, %cst_97 [1] : vector<2x16xf32> to vector<2xf32>
    %263 = vector.shape_cast %262 : vector<2xf32> to vector<2x1xf32>
    %cst_98 = arith.constant 1.600000e+01 : f32
    %264 = vector.broadcast %cst_98 : f32 to vector<2x1xf32>
    %265 = arith.divf %263, %264 : vector<2x1xf32>
    %cst_99 = arith.constant 9.99999974E-6 : f32
    %266 = vector.broadcast %cst_99 : f32 to vector<2x1xf32>
    %267 = arith.addf %265, %266 : vector<2x1xf32>
    %268 = math.rsqrt %267 : vector<2x1xf32>
    %269 = vector.broadcast %268 : vector<2x1xf32> to vector<2x16xf32>
    %270 = arith.mulf %260, %269 : vector<2x16xf32>
    %271 = vector.broadcast %253 : vector<1x16xf32> to vector<2x16xf32>
    %272 = arith.mulf %270, %271 : vector<2x16xf32>
    %273 = vector.broadcast %254 : vector<1x16xf32> to vector<2x16xf32>
    %274 = arith.addf %272, %273 : vector<2x16xf32>
    %cst_100 = arith.constant 0.000000e+00 : f32
    %275 = vector.broadcast %cst_100 : f32 to vector<2x16xf32>
    %276 = arith.cmpf oge, %274, %275 : vector<2x16xf32>
    %cst_101 = arith.constant 2.000000e-01 : f32
    %277 = vector.broadcast %cst_101 : f32 to vector<2x16xf32>
    %278 = arith.mulf %277, %274 : vector<2x16xf32>
    %279 = arith.select %276, %274, %278 : vector<2x16xi1>, vector<2x16xf32>
    %280 = arith.truncf %279 : vector<2x16xf32> to vector<2x16xbf16>
    %c368 = arith.constant 368 : index
    %c0_102 = arith.constant 0 : index
    %281 = vector.load %arg1[%c368, %c0_102] : memref<720x128xbf16, #tpu.memory_space<vmem>>, vector<16x32xbf16>
    %cst_103 = arith.constant dense<0.000000e+00> : vector<2x32xf32>
    %282 = tpu.matmul %280, %281, %cst_103 {dimension_numbers = #tpu.dot_dimension_numbers<[1], [0], [0], [1], [0, 0, 1, 1], [], []>} : vector<2x16xbf16>, vector<16x32xbf16>, vector<2x32xf32> -> vector<2x32xf32>
    %c25 = arith.constant 25 : index
    %c0_104 = arith.constant 0 : index
    %283 = vector.load %arg2[%c25, %c0_104] : memref<48x128xf32, #tpu.memory_space<vmem>>, vector<1x32xf32>
    %284 = vector.broadcast %283 : vector<1x32xf32> to vector<2x32xf32>
    %285 = arith.addf %282, %284 : vector<2x32xf32>
    %c26 = arith.constant 26 : index
    %c0_105 = arith.constant 0 : index
    %286 = vector.load %arg2[%c26, %c0_105] : memref<48x128xf32, #tpu.memory_space<vmem>>, vector<1x32xf32>
    %c27 = arith.constant 27 : index
    %c0_106 = arith.constant 0 : index
    %287 = vector.load %arg2[%c27, %c0_106] : memref<48x128xf32, #tpu.memory_space<vmem>>, vector<1x32xf32>
    %cst_107 = arith.constant dense<0.000000e+00> : vector<2xf32>
    %288 = vector.multi_reduction <add>, %285, %cst_107 [1] : vector<2x32xf32> to vector<2xf32>
    %289 = vector.shape_cast %288 : vector<2xf32> to vector<2x1xf32>
    %cst_108 = arith.constant 3.200000e+01 : f32
    %290 = vector.broadcast %cst_108 : f32 to vector<2x1xf32>
    %291 = arith.divf %289, %290 : vector<2x1xf32>
    %292 = vector.broadcast %291 : vector<2x1xf32> to vector<2x32xf32>
    %293 = arith.subf %285, %292 : vector<2x32xf32>
    %294 = arith.mulf %293, %293 : vector<2x32xf32>
    %cst_109 = arith.constant dense<0.000000e+00> : vector<2xf32>
    %295 = vector.multi_reduction <add>, %294, %cst_109 [1] : vector<2x32xf32> to vector<2xf32>
    %296 = vector.shape_cast %295 : vector<2xf32> to vector<2x1xf32>
    %cst_110 = arith.constant 3.200000e+01 : f32
    %297 = vector.broadcast %cst_110 : f32 to vector<2x1xf32>
    %298 = arith.divf %296, %297 : vector<2x1xf32>
    %cst_111 = arith.constant 9.99999974E-6 : f32
    %299 = vector.broadcast %cst_111 : f32 to vector<2x1xf32>
    %300 = arith.addf %298, %299 : vector<2x1xf32>
    %301 = math.rsqrt %300 : vector<2x1xf32>
    %302 = vector.broadcast %301 : vector<2x1xf32> to vector<2x32xf32>
    %303 = arith.mulf %293, %302 : vector<2x32xf32>
    %304 = vector.broadcast %286 : vector<1x32xf32> to vector<2x32xf32>
    %305 = arith.mulf %303, %304 : vector<2x32xf32>
    %306 = vector.broadcast %287 : vector<1x32xf32> to vector<2x32xf32>
    %307 = arith.addf %305, %306 : vector<2x32xf32>
    %cst_112 = arith.constant 0.000000e+00 : f32
    %308 = vector.broadcast %cst_112 : f32 to vector<2x32xf32>
    %309 = arith.cmpf oge, %307, %308 : vector<2x32xf32>
    %cst_113 = arith.constant 2.000000e-01 : f32
    %310 = vector.broadcast %cst_113 : f32 to vector<2x32xf32>
    %311 = arith.mulf %310, %307 : vector<2x32xf32>
    %312 = arith.select %309, %307, %311 : vector<2x32xi1>, vector<2x32xf32>
    %313 = arith.truncf %312 : vector<2x32xf32> to vector<2x32xbf16>
    %c384 = arith.constant 384 : index
    %c0_114 = arith.constant 0 : index
    %314 = vector.load %arg1[%c384, %c0_114] : memref<720x128xbf16, #tpu.memory_space<vmem>>, vector<32x11xbf16>
    %cst_115 = arith.constant dense<0.000000e+00> : vector<2x11xf32>
    %315 = tpu.matmul %313, %314, %cst_115 {dimension_numbers = #tpu.dot_dimension_numbers<[1], [0], [0], [1], [0, 0, 1, 1], [], []>} : vector<2x32xbf16>, vector<32x11xbf16>, vector<2x11xf32> -> vector<2x11xf32>
    %c28 = arith.constant 28 : index
    %c0_116 = arith.constant 0 : index
    %316 = vector.load %arg2[%c28, %c0_116] : memref<48x128xf32, #tpu.memory_space<vmem>>, vector<1x11xf32>
    %317 = vector.broadcast %316 : vector<1x11xf32> to vector<2x11xf32>
    %318 = arith.addf %315, %317 : vector<2x11xf32>
    %cst_117 = arith.constant 5.000000e-01 : f32
    %319 = vector.broadcast %cst_117 : f32 to vector<2x16xf32>
    %320 = arith.mulf %319, %171 : vector<2x16xf32>
    %321 = math.exp %320 : vector<2x16xf32>
    %322 = arith.mulf %321, %1 : vector<2x16xf32>
    %323 = arith.addf %170, %322 : vector<2x16xf32>
    %cst_118 = arith.constant dense<0xFF800000> : vector<2xf32>
    %324 = vector.multi_reduction <maximumf>, %177, %cst_118 [1] : vector<2x128xf32> to vector<2xf32>
    %325 = vector.shape_cast %324 : vector<2xf32> to vector<2x1xf32>
    %326 = tpu.iota {dimensions = array<i32: 1>} : vector<2x128xi32>
    %327 = vector.broadcast %325 : vector<2x1xf32> to vector<2x128xf32>
    %328 = arith.cmpf oeq, %177, %327 : vector<2x128xf32>
    %c128_i32 = arith.constant 128 : i32
    %329 = vector.broadcast %c128_i32 : i32 to vector<2x128xi32>
    %330 = arith.select %328, %326, %329 : vector<2x128xi1>, vector<2x128xi32>
    %cst_119 = arith.constant dense<2147483647> : vector<2xi32>
    %331 = vector.multi_reduction <minsi>, %330, %cst_119 [1] : vector<2x128xi32> to vector<2xi32>
    %332 = vector.shape_cast %331 : vector<2xi32> to vector<2x1xi32>
    %333 = vector.broadcast %332 : vector<2x1xi32> to vector<2x128xi32>
    %334 = arith.cmpi eq, %326, %333 : vector<2x128xi32>
    %335 = arith.extui %334 : vector<2x128xi1> to vector<2x128xi32>
    %336 = arith.sitofp %335 : vector<2x128xi32> to vector<2x128xf32>
    %337 = arith.truncf %323 : vector<2x16xf32> to vector<2x16xbf16>
    %c416 = arith.constant 416 : index
    %c0_120 = arith.constant 0 : index
    %338 = vector.load %arg1[%c416, %c0_120] : memref<720x128xbf16, #tpu.memory_space<vmem>>, vector<16x32xbf16>
    %cst_121 = arith.constant dense<0.000000e+00> : vector<2x32xf32>
    %339 = tpu.matmul %337, %338, %cst_121 {dimension_numbers = #tpu.dot_dimension_numbers<[1], [0], [0], [1], [0, 0, 1, 1], [], []>} : vector<2x16xbf16>, vector<16x32xbf16>, vector<2x32xf32> -> vector<2x32xf32>
    %340 = arith.truncf %336 : vector<2x128xf32> to vector<2x128xbf16>
    %c432 = arith.constant 432 : index
    %c0_122 = arith.constant 0 : index
    %341 = vector.load %arg1[%c432, %c0_122] : memref<720x128xbf16, #tpu.memory_space<vmem>>, vector<128x32xbf16>
    %cst_123 = arith.constant dense<0.000000e+00> : vector<2x32xf32>
    %342 = tpu.matmul %340, %341, %cst_123 {dimension_numbers = #tpu.dot_dimension_numbers<[1], [0], [0], [1], [0, 0, 1, 1], [], []>} : vector<2x128xbf16>, vector<128x32xbf16>, vector<2x32xf32> -> vector<2x32xf32>
    %343 = arith.addf %339, %342 : vector<2x32xf32>
    %c29 = arith.constant 29 : index
    %c0_124 = arith.constant 0 : index
    %344 = vector.load %arg2[%c29, %c0_124] : memref<48x128xf32, #tpu.memory_space<vmem>>, vector<1x32xf32>
    %345 = vector.broadcast %344 : vector<1x32xf32> to vector<2x32xf32>
    %346 = arith.addf %343, %345 : vector<2x32xf32>
    %c30 = arith.constant 30 : index
    %c0_125 = arith.constant 0 : index
    %347 = vector.load %arg2[%c30, %c0_125] : memref<48x128xf32, #tpu.memory_space<vmem>>, vector<1x32xf32>
    %c31 = arith.constant 31 : index
    %c0_126 = arith.constant 0 : index
    %348 = vector.load %arg2[%c31, %c0_126] : memref<48x128xf32, #tpu.memory_space<vmem>>, vector<1x32xf32>
    %cst_127 = arith.constant dense<0.000000e+00> : vector<2xf32>
    %349 = vector.multi_reduction <add>, %346, %cst_127 [1] : vector<2x32xf32> to vector<2xf32>
    %350 = vector.shape_cast %349 : vector<2xf32> to vector<2x1xf32>
    %cst_128 = arith.constant 3.200000e+01 : f32
    %351 = vector.broadcast %cst_128 : f32 to vector<2x1xf32>
    %352 = arith.divf %350, %351 : vector<2x1xf32>
    %353 = vector.broadcast %352 : vector<2x1xf32> to vector<2x32xf32>
    %354 = arith.subf %346, %353 : vector<2x32xf32>
    %355 = arith.mulf %354, %354 : vector<2x32xf32>
    %cst_129 = arith.constant dense<0.000000e+00> : vector<2xf32>
    %356 = vector.multi_reduction <add>, %355, %cst_129 [1] : vector<2x32xf32> to vector<2xf32>
    %357 = vector.shape_cast %356 : vector<2xf32> to vector<2x1xf32>
    %cst_130 = arith.constant 3.200000e+01 : f32
    %358 = vector.broadcast %cst_130 : f32 to vector<2x1xf32>
    %359 = arith.divf %357, %358 : vector<2x1xf32>
    %cst_131 = arith.constant 9.99999974E-6 : f32
    %360 = vector.broadcast %cst_131 : f32 to vector<2x1xf32>
    %361 = arith.addf %359, %360 : vector<2x1xf32>
    %362 = math.rsqrt %361 : vector<2x1xf32>
    %363 = vector.broadcast %362 : vector<2x1xf32> to vector<2x32xf32>
    %364 = arith.mulf %354, %363 : vector<2x32xf32>
    %365 = vector.broadcast %347 : vector<1x32xf32> to vector<2x32xf32>
    %366 = arith.mulf %364, %365 : vector<2x32xf32>
    %367 = vector.broadcast %348 : vector<1x32xf32> to vector<2x32xf32>
    %368 = arith.addf %366, %367 : vector<2x32xf32>
    %cst_132 = arith.constant 0.000000e+00 : f32
    %369 = vector.broadcast %cst_132 : f32 to vector<2x32xf32>
    %370 = arith.cmpf oge, %368, %369 : vector<2x32xf32>
    %cst_133 = arith.constant 2.000000e-01 : f32
    %371 = vector.broadcast %cst_133 : f32 to vector<2x32xf32>
    %372 = arith.mulf %371, %368 : vector<2x32xf32>
    %373 = arith.select %370, %368, %372 : vector<2x32xi1>, vector<2x32xf32>
    %374 = arith.truncf %373 : vector<2x32xf32> to vector<2x32xbf16>
    %c560 = arith.constant 560 : index
    %c0_134 = arith.constant 0 : index
    %375 = vector.load %arg1[%c560, %c0_134] : memref<720x128xbf16, #tpu.memory_space<vmem>>, vector<32x64xbf16>
    %cst_135 = arith.constant dense<0.000000e+00> : vector<2x64xf32>
    %376 = tpu.matmul %374, %375, %cst_135 {dimension_numbers = #tpu.dot_dimension_numbers<[1], [0], [0], [1], [0, 0, 1, 1], [], []>} : vector<2x32xbf16>, vector<32x64xbf16>, vector<2x64xf32> -> vector<2x64xf32>
    %c32 = arith.constant 32 : index
    %c0_136 = arith.constant 0 : index
    %377 = vector.load %arg2[%c32, %c0_136] : memref<48x128xf32, #tpu.memory_space<vmem>>, vector<1x64xf32>
    %378 = vector.broadcast %377 : vector<1x64xf32> to vector<2x64xf32>
    %379 = arith.addf %376, %378 : vector<2x64xf32>
    %c33 = arith.constant 33 : index
    %c0_137 = arith.constant 0 : index
    %380 = vector.load %arg2[%c33, %c0_137] : memref<48x128xf32, #tpu.memory_space<vmem>>, vector<1x64xf32>
    %c34 = arith.constant 34 : index
    %c0_138 = arith.constant 0 : index
    %381 = vector.load %arg2[%c34, %c0_138] : memref<48x128xf32, #tpu.memory_space<vmem>>, vector<1x64xf32>
    %cst_139 = arith.constant dense<0.000000e+00> : vector<2xf32>
    %382 = vector.multi_reduction <add>, %379, %cst_139 [1] : vector<2x64xf32> to vector<2xf32>
    %383 = vector.shape_cast %382 : vector<2xf32> to vector<2x1xf32>
    %cst_140 = arith.constant 6.400000e+01 : f32
    %384 = vector.broadcast %cst_140 : f32 to vector<2x1xf32>
    %385 = arith.divf %383, %384 : vector<2x1xf32>
    %386 = vector.broadcast %385 : vector<2x1xf32> to vector<2x64xf32>
    %387 = arith.subf %379, %386 : vector<2x64xf32>
    %388 = arith.mulf %387, %387 : vector<2x64xf32>
    %cst_141 = arith.constant dense<0.000000e+00> : vector<2xf32>
    %389 = vector.multi_reduction <add>, %388, %cst_141 [1] : vector<2x64xf32> to vector<2xf32>
    %390 = vector.shape_cast %389 : vector<2xf32> to vector<2x1xf32>
    %cst_142 = arith.constant 6.400000e+01 : f32
    %391 = vector.broadcast %cst_142 : f32 to vector<2x1xf32>
    %392 = arith.divf %390, %391 : vector<2x1xf32>
    %cst_143 = arith.constant 9.99999974E-6 : f32
    %393 = vector.broadcast %cst_143 : f32 to vector<2x1xf32>
    %394 = arith.addf %392, %393 : vector<2x1xf32>
    %395 = math.rsqrt %394 : vector<2x1xf32>
    %396 = vector.broadcast %395 : vector<2x1xf32> to vector<2x64xf32>
    %397 = arith.mulf %387, %396 : vector<2x64xf32>
    %398 = vector.broadcast %380 : vector<1x64xf32> to vector<2x64xf32>
    %399 = arith.mulf %397, %398 : vector<2x64xf32>
    %400 = vector.broadcast %381 : vector<1x64xf32> to vector<2x64xf32>
    %401 = arith.addf %399, %400 : vector<2x64xf32>
    %cst_144 = arith.constant 0.000000e+00 : f32
    %402 = vector.broadcast %cst_144 : f32 to vector<2x64xf32>
    %403 = arith.cmpf oge, %401, %402 : vector<2x64xf32>
    %cst_145 = arith.constant 2.000000e-01 : f32
    %404 = vector.broadcast %cst_145 : f32 to vector<2x64xf32>
    %405 = arith.mulf %404, %401 : vector<2x64xf32>
    %406 = arith.select %403, %401, %405 : vector<2x64xi1>, vector<2x64xf32>
    %407 = arith.truncf %406 : vector<2x64xf32> to vector<2x64xbf16>
    %c592 = arith.constant 592 : index
    %c0_146 = arith.constant 0 : index
    %408 = vector.load %arg1[%c592, %c0_146] : memref<720x128xbf16, #tpu.memory_space<vmem>>, vector<64x64xbf16>
    %cst_147 = arith.constant dense<0.000000e+00> : vector<2x64xf32>
    %409 = tpu.matmul %407, %408, %cst_147 {dimension_numbers = #tpu.dot_dimension_numbers<[1], [0], [0], [1], [0, 0, 1, 1], [], []>} : vector<2x64xbf16>, vector<64x64xbf16>, vector<2x64xf32> -> vector<2x64xf32>
    %c35 = arith.constant 35 : index
    %c0_148 = arith.constant 0 : index
    %410 = vector.load %arg2[%c35, %c0_148] : memref<48x128xf32, #tpu.memory_space<vmem>>, vector<1x64xf32>
    %411 = vector.broadcast %410 : vector<1x64xf32> to vector<2x64xf32>
    %412 = arith.addf %409, %411 : vector<2x64xf32>
    %c36 = arith.constant 36 : index
    %c0_149 = arith.constant 0 : index
    %413 = vector.load %arg2[%c36, %c0_149] : memref<48x128xf32, #tpu.memory_space<vmem>>, vector<1x64xf32>
    %c37 = arith.constant 37 : index
    %c0_150 = arith.constant 0 : index
    %414 = vector.load %arg2[%c37, %c0_150] : memref<48x128xf32, #tpu.memory_space<vmem>>, vector<1x64xf32>
    %cst_151 = arith.constant dense<0.000000e+00> : vector<2xf32>
    %415 = vector.multi_reduction <add>, %412, %cst_151 [1] : vector<2x64xf32> to vector<2xf32>
    %416 = vector.shape_cast %415 : vector<2xf32> to vector<2x1xf32>
    %cst_152 = arith.constant 6.400000e+01 : f32
    %417 = vector.broadcast %cst_152 : f32 to vector<2x1xf32>
    %418 = arith.divf %416, %417 : vector<2x1xf32>
    %419 = vector.broadcast %418 : vector<2x1xf32> to vector<2x64xf32>
    %420 = arith.subf %412, %419 : vector<2x64xf32>
    %421 = arith.mulf %420, %420 : vector<2x64xf32>
    %cst_153 = arith.constant dense<0.000000e+00> : vector<2xf32>
    %422 = vector.multi_reduction <add>, %421, %cst_153 [1] : vector<2x64xf32> to vector<2xf32>
    %423 = vector.shape_cast %422 : vector<2xf32> to vector<2x1xf32>
    %cst_154 = arith.constant 6.400000e+01 : f32
    %424 = vector.broadcast %cst_154 : f32 to vector<2x1xf32>
    %425 = arith.divf %423, %424 : vector<2x1xf32>
    %cst_155 = arith.constant 9.99999974E-6 : f32
    %426 = vector.broadcast %cst_155 : f32 to vector<2x1xf32>
    %427 = arith.addf %425, %426 : vector<2x1xf32>
    %428 = math.rsqrt %427 : vector<2x1xf32>
    %429 = vector.broadcast %428 : vector<2x1xf32> to vector<2x64xf32>
    %430 = arith.mulf %420, %429 : vector<2x64xf32>
    %431 = vector.broadcast %413 : vector<1x64xf32> to vector<2x64xf32>
    %432 = arith.mulf %430, %431 : vector<2x64xf32>
    %433 = vector.broadcast %414 : vector<1x64xf32> to vector<2x64xf32>
    %434 = arith.addf %432, %433 : vector<2x64xf32>
    %cst_156 = arith.constant 0.000000e+00 : f32
    %435 = vector.broadcast %cst_156 : f32 to vector<2x64xf32>
    %436 = arith.cmpf oge, %434, %435 : vector<2x64xf32>
    %cst_157 = arith.constant 2.000000e-01 : f32
    %437 = vector.broadcast %cst_157 : f32 to vector<2x64xf32>
    %438 = arith.mulf %437, %434 : vector<2x64xf32>
    %439 = arith.select %436, %434, %438 : vector<2x64xi1>, vector<2x64xf32>
    %440 = arith.truncf %439 : vector<2x64xf32> to vector<2x64xbf16>
    %c656 = arith.constant 656 : index
    %c0_158 = arith.constant 0 : index
    %441 = vector.load %arg1[%c656, %c0_158] : memref<720x128xbf16, #tpu.memory_space<vmem>>, vector<64x64xbf16>
    %cst_159 = arith.constant dense<0.000000e+00> : vector<2x64xf32>
    %442 = tpu.matmul %440, %441, %cst_159 {dimension_numbers = #tpu.dot_dimension_numbers<[1], [0], [0], [1], [0, 0, 1, 1], [], []>} : vector<2x64xbf16>, vector<64x64xbf16>, vector<2x64xf32> -> vector<2x64xf32>
    %c38 = arith.constant 38 : index
    %c0_160 = arith.constant 0 : index
    %443 = vector.load %arg2[%c38, %c0_160] : memref<48x128xf32, #tpu.memory_space<vmem>>, vector<1x64xf32>
    %444 = vector.broadcast %443 : vector<1x64xf32> to vector<2x64xf32>
    %445 = arith.addf %442, %444 : vector<2x64xf32>
    %c39 = arith.constant 39 : index
    %c0_161 = arith.constant 0 : index
    %446 = vector.load %arg2[%c39, %c0_161] : memref<48x128xf32, #tpu.memory_space<vmem>>, vector<1x64xf32>
    %c40 = arith.constant 40 : index
    %c0_162 = arith.constant 0 : index
    %447 = vector.load %arg2[%c40, %c0_162] : memref<48x128xf32, #tpu.memory_space<vmem>>, vector<1x64xf32>
    %cst_163 = arith.constant dense<0.000000e+00> : vector<2xf32>
    %448 = vector.multi_reduction <add>, %445, %cst_163 [1] : vector<2x64xf32> to vector<2xf32>
    %449 = vector.shape_cast %448 : vector<2xf32> to vector<2x1xf32>
    %cst_164 = arith.constant 6.400000e+01 : f32
    %450 = vector.broadcast %cst_164 : f32 to vector<2x1xf32>
    %451 = arith.divf %449, %450 : vector<2x1xf32>
    %452 = vector.broadcast %451 : vector<2x1xf32> to vector<2x64xf32>
    %453 = arith.subf %445, %452 : vector<2x64xf32>
    %454 = arith.mulf %453, %453 : vector<2x64xf32>
    %cst_165 = arith.constant dense<0.000000e+00> : vector<2xf32>
    %455 = vector.multi_reduction <add>, %454, %cst_165 [1] : vector<2x64xf32> to vector<2xf32>
    %456 = vector.shape_cast %455 : vector<2xf32> to vector<2x1xf32>
    %cst_166 = arith.constant 6.400000e+01 : f32
    %457 = vector.broadcast %cst_166 : f32 to vector<2x1xf32>
    %458 = arith.divf %456, %457 : vector<2x1xf32>
    %cst_167 = arith.constant 9.99999974E-6 : f32
    %459 = vector.broadcast %cst_167 : f32 to vector<2x1xf32>
    %460 = arith.addf %458, %459 : vector<2x1xf32>
    %461 = math.rsqrt %460 : vector<2x1xf32>
    %462 = vector.broadcast %461 : vector<2x1xf32> to vector<2x64xf32>
    %463 = arith.mulf %453, %462 : vector<2x64xf32>
    %464 = vector.broadcast %446 : vector<1x64xf32> to vector<2x64xf32>
    %465 = arith.mulf %463, %464 : vector<2x64xf32>
    %466 = vector.broadcast %447 : vector<1x64xf32> to vector<2x64xf32>
    %467 = arith.addf %465, %466 : vector<2x64xf32>
    %cst_168 = arith.constant 0.000000e+00 : f32
    %468 = vector.broadcast %cst_168 : f32 to vector<2x384xf32>
    %c0_169 = arith.constant 0 : index
    %c0_170 = arith.constant 0 : index
    %469 = vector.load %arg3[%c0_169, %c0_170] : memref<2x384xf32, #tpu.memory_space<vmem>>, vector<2x384xf32>
    tpu.vector_store %arg3[%c0_169, %c0_170], %468 {strides = array<i32>} : memref<2x384xf32, #tpu.memory_space<vmem>>, vector<2x384xf32>,
    %c0_171 = arith.constant 0 : index
    %c0_172 = arith.constant 0 : index
    %470 = vector.load %arg3[%c0_171, %c0_172] : memref<2x384xf32, #tpu.memory_space<vmem>>, vector<2x128xf32>
    tpu.vector_store %arg3[%c0_171, %c0_172], %177 {strides = array<i32>} : memref<2x384xf32, #tpu.memory_space<vmem>>, vector<2x128xf32>,
    %c0_173 = arith.constant 0 : index
    %c128_174 = arith.constant 128 : index
    %471 = vector.load %arg3[%c0_173, %c128_174] : memref<2x384xf32, #tpu.memory_space<vmem>>, vector<2x128xf32>
    tpu.vector_store %arg3[%c0_173, %c128_174], %336 {strides = array<i32>} : memref<2x384xf32, #tpu.memory_space<vmem>>, vector<2x128xf32>,
    %c0_175 = arith.constant 0 : index
    %c256_176 = arith.constant 256 : index
    %472 = vector.load %arg3[%c0_175, %c256_176] : memref<2x384xf32, #tpu.memory_space<vmem>>, vector<2x64xf32>
    tpu.vector_store %arg3[%c0_175, %c256_176], %467 {strides = array<i32>} : memref<2x384xf32, #tpu.memory_space<vmem>>, vector<2x64xf32>,
    %c0_177 = arith.constant 0 : index
    %c320_178 = arith.constant 320 : index
    %473 = vector.load %arg3[%c0_177, %c320_178] : memref<2x384xf32, #tpu.memory_space<vmem>>, vector<2x16xf32>
    tpu.vector_store %arg3[%c0_177, %c320_178], %170 {strides = array<i32>} : memref<2x384xf32, #tpu.memory_space<vmem>>, vector<2x16xf32>,
    %c0_179 = arith.constant 0 : index
    %c336_180 = arith.constant 336 : index
    %474 = vector.load %arg3[%c0_179, %c336_180] : memref<2x384xf32, #tpu.memory_space<vmem>>, vector<2x16xf32>
    tpu.vector_store %arg3[%c0_179, %c336_180], %171 {strides = array<i32>} : memref<2x384xf32, #tpu.memory_space<vmem>>, vector<2x16xf32>,
    %c0_181 = arith.constant 0 : index
    %c352_182 = arith.constant 352 : index
    %475 = vector.load %arg3[%c0_181, %c352_182] : memref<2x384xf32, #tpu.memory_space<vmem>>, vector<2x11xf32>
    tpu.vector_store %arg3[%c0_181, %c352_182], %318 {strides = array<i32>} : memref<2x384xf32, #tpu.memory_space<vmem>>, vector<2x11xf32>,
    return
  }
}

</mosaic_0001>

<llo_original>
// kernel: forward.3
$region0: #{forward.3}
  #allocation0 [shape = 'u32[]', space=smem, size = 0x4, offset = 0x4, fixed_abs, tag = 'smem constant byte address 0x4 - core index']
  #allocation1 [shape = 'u32[144,128]{1,0:T(1,128)}', space=vmem, size = 0x12000, scoped, tag = 'internal scratch']
  %s0 = inlined_call_operand.vmem [shape: f32[2,128], index: 0, kind: input, shape index: {}]
  %s1 = inlined_call_operand.hbm [shape: bf16[720,128], index: 1, kind: input, shape index: {}]
  %s2 = inlined_call_operand.vmem [shape: f32[48,128], index: 2, kind: input, shape index: {}]
  %s3 = inlined_call_operand.vmem [shape: f32[2,384], index: 3, kind: output, shape index: {}]
  %s4 = sld [smem:[#allocation0]]
  $region26: #{forward.3} parent=0
    _
  %s6 = ssub.s32 1, %s4
  %s7 = scalar_select 0, %s6, %s4
  $region1: #{forward.3} parent=0
    #allocation2 [shape = 'u8[184320]{0}', space=vmem, size = 0x2d000, scoped, tag = 'input window, operand 1, single buffered']
    #allocation3 [shape = 's32[1]{0}', space=sflag, size = 0x4, scoped, tag = 'scoped memory for forward.3']
    %8 = vsyncpa [#allocation3], 0
    // Predicated region
    $region2: #{forward.3} parent=1 // pred_check
      _
    $region3: #{forward.3} parent=1 // pred_check_branch
      %10 = sbr.rel (0) target = $region5
    $region4: #{forward.3} parent=1 // pred_region
      _
    $region5: #{forward.3} parent=1 // pred_fallthru
      _
    // Predicated region
    $region6: #{forward.3} parent=1 // pred_check
      _
    $region7: #{forward.3} parent=1 // pred_check_branch
      %12 = sbr.rel (0) target = $region9
    $region8: #{forward.3} parent=1 // pred_region
      %s14 = ssub.s32 5760, 5760
      %15 = vsyncadd [#allocation3], %s14
      %s16 = sshll.u32 [#allocation2], 4
      %s17 = int_to_ptr.vmem [resolvable:$true] %s16
      %22 = dma.hbm_to_vmem [thread:$0]  %s1, 5760, %s17, [#allocation3], 64, 64, 4
    $region9: #{forward.3} parent=1 // pred_fallthru
      _
    // Predicated region
    $region10: #{forward.3} parent=1 // pred_check
      _
    $region11: #{forward.3} parent=1 // pred_check_branch
      %24 = sbr.rel (0) target = $region13
    $region12: #{forward.3} parent=1 // pred_region
      _
    $region13: #{forward.3} parent=1 // pred_fallthru
      _
    // Predicated region
    $region14: #{forward.3} parent=1 // pred_check
      _
    $region15: #{forward.3} parent=1 // pred_check_branch
      %26 = sbr.rel (0) target = $region17
    $region16: #{forward.3} parent=1 // pred_region
      %27 = dma.done [#allocation3], 5760
    $region17: #{forward.3} parent=1 // pred_fallthru
      _
    %v29 = vld [vmem:[%s0] sm:$0x3]
    %v30 = vpack.c.bf16 %v29, %v29
    %v31 = vld [vmem:[#allocation2] sm:$0xf]
    %v32 = vld [vmem:[#allocation2 + $0x4] sm:$0xf]
    %v33 = vld [vmem:[#allocation2 + $0x8] sm:$0xf]
    %v34 = vld [vmem:[#allocation2 + $0xc] sm:$0xf]
    %v35 = vld [vmem:[#allocation2 + $0x10] sm:$0xf]
    %v36 = vld [vmem:[#allocation2 + $0x14] sm:$0xf]
    %v37 = vld [vmem:[#allocation2 + $0x18] sm:$0xf]
    %v38 = vld [vmem:[#allocation2 + $0x1c] sm:$0xf]
    %v39 = vld [vmem:[#allocation2 + $0x20] sm:$0xf]
    %v40 = vld [vmem:[#allocation2 + $0x24] sm:$0xf]
    %v41 = vld [vmem:[#allocation2 + $0x28] sm:$0xf]
    %v42 = vld [vmem:[#allocation2 + $0x2c] sm:$0xf]
    %v43 = vld [vmem:[#allocation2 + $0x30] sm:$0xf]
    %v44 = vld [vmem:[#allocation2 + $0x34] sm:$0xf]
    %v45 = vld [vmem:[#allocation2 + $0x38] sm:$0xf]
    %v46 = vld [vmem:[#allocation2 + $0x3c] sm:$0xf]
    %v47 = vld [vmem:[%s2] sm:$0x1]
    %v48 = vlaneseq
    %v49 = vshrl.u32 %v48, 7
    %v50 = vsub.s32 0, %v49
    %v51 = vrot.slane %v47, %v50
    %v68 = vunpack.c.l.b16 %v31
    %v69 = vunpack.c.l.b16 %v32
    %v70 = vunpack.c.l.b16 %v33
    %v71 = vunpack.c.l.b16 %v34
    %v72 = vunpack.c.l.b16 %v35
    %v73 = vunpack.c.l.b16 %v36
    %v74 = vunpack.c.l.b16 %v37
    %v75 = vunpack.c.l.b16 %v38
    %v76 = vunpack.c.l.b16 %v39
    %v77 = vunpack.c.l.b16 %v40
    %v78 = vunpack.c.l.b16 %v41
    %v79 = vunpack.c.l.b16 %v42
    %v80 = vunpack.c.l.b16 %v43
    %v81 = vunpack.c.l.b16 %v44
    %v82 = vunpack.c.l.b16 %v45
    %v83 = vunpack.c.l.b16 %v46
    %v84 = vpack.c.b16 %v69, %v68
    %v85 = vpack.c.b16 %v71, %v70
    %v86 = vpack.c.b16 %v73, %v72
    %v87 = vpack.c.b16 %v75, %v74
    %v88 = vpack.c.b16 %v77, %v76
    %v89 = vpack.c.b16 %v79, %v78
    %v90 = vpack.c.b16 %v81, %v80
    %v91 = vpack.c.b16 %v83, %v82
    %100 = vmatprep.subr.bf16.mxu0 0
    %101 = vmatpush1.bf16.msra.mxu0 %v84
    %102 = vmatprep.subr.bf16.mxu0 0
    %103 = vmatpush1.bf16.msra.mxu0 %v85
    %104 = vmatprep.subr.bf16.mxu0 0
    %105 = vmatpush1.bf16.msra.mxu0 %v86
    %106 = vmatprep.subr.bf16.mxu0 0
    %107 = vmatpush1.bf16.msra.mxu0 %v87
    %108 = vmatprep.subr.bf16.mxu0 0
    %109 = vmatpush1.bf16.msra.mxu0 %v88
    %110 = vmatprep.subr.bf16.mxu0 0
    %111 = vmatpush1.bf16.msra.mxu0 %v89
    %112 = vmatprep.subr.bf16.mxu0 0
    %113 = vmatpush1.bf16.msra.mxu0 %v90
    %114 = vmatprep.subr.bf16.mxu0 0
    %115 = vmatpush1.bf16.msra.mxu0 %v91
    %116 = vmatprep.subr.bf16.mxu0 0
    %117 = vmatpush1.bf16.msra.mxu0 0
    %118 = vmatprep.subr.bf16.mxu0 0
    %119 = vmatpush1.bf16.msra.mxu0 0
    %120 = vmatprep.subr.bf16.mxu0 0
    %121 = vmatpush1.bf16.msra.mxu0 0
    %122 = vmatprep.subr.bf16.mxu0 0
    %123 = vmatpush1.bf16.msra.mxu0 0
    %124 = vmatprep.subr.bf16.mxu0 0
    %125 = vmatpush1.bf16.msra.mxu0 0
    %126 = vmatprep.subr.bf16.mxu0 0
    %127 = vmatpush1.bf16.msra.mxu0 0
    %128 = vmatprep.subr.bf16.mxu0 0
    %129 = vmatpush1.bf16.msra.mxu0 0
    %130 = vmatprep.subr.bf16.mxu0 0
    %131 = vmatpush1.bf16.msra.mxu0 0
    %132 = vmatprep.mubr.bf16.mxu0 0
    %133 = vmatmul.mubr.bf16.gmra.mrb[0].mxu0 %v30
    %v134 = vpop.f32.mrb[0].mxu0
    %v135 = vadd.f32 %v51, %v134
    %v136 = vpop.f32.mrb[0].mxu0
    %v137 = vpop.f32.mrb[0].mxu0
    %v138 = vpop.f32.mrb[0].mxu0
    %139 = vdwg.mxu0
    %v140 = vld [vmem:[%s2 + $0x1] sm:$0x1]
    %v141 = vld [vmem:[%s2 + $0x2] sm:$0x1]
    %vm142 = vcmask 517120
    %v143 = vsel %vm142, %v135, 0.0
    %144 = vadd.xlane.f32.xlu0 %v143
    %v145 = vpop.xlane.xlu0 %144
    %v146 = vrcp.pop 64.0
    %v147 = vmul.f32 %v145, %v146
    %v148 = vsub.f32 %v135, %v147
    %v149 = vmul.f32 %v148, %v148
    %v150 = vsel %vm142, %v149, 0.0
    %151 = vadd.xlane.f32.xlu0 %v150
    %v152 = vpop.xlane.xlu0 %151
    %v153 = vmul.f32 %v152, %v146
    %v154 = vadd.f32 %v153, 1e-05
    %v155 = vrsqrt.pop %v154
    %v156 = vmul.f32 %v148, %v155
    %v157 = vlaneseq
    %v158 = vshrl.u32 %v157, 7
    %v159 = vsub.s32 0, %v158
    %v160 = vrot.slane %v140, %v159
    %v161 = vmul.f32 %v156, %v160
    %v162 = vlaneseq
    %v163 = vshrl.u32 %v162, 7
    %v164 = vsub.s32 0, %v163
    %v165 = vrot.slane %v141, %v164
    %v166 = vadd.f32 %v161, %v165
    %vm167 = vcmp.ge.f32.partialorder %v166, 0.0
    %v168 = vmul.f32 %v166, 0.2
    %v169 = vsel %vm167, %v166, %v168
    %v170 = vpack.c.bf16 %v169, %v169
    %v171 = vld [vmem:[#allocation2 + $0x40] sm:$0xf]
    %v172 = vld [vmem:[#allocation2 + $0x44] sm:$0xf]
    %v173 = vld [vmem:[#allocation2 + $0x48] sm:$0xf]
    %v174 = vld [vmem:[#allocation2 + $0x4c] sm:$0xf]
    %v175 = vld [vmem:[#allocation2 + $0x50] sm:$0xf]
    %v176 = vld [vmem:[#allocation2 + $0x54] sm:$0xf]
    %v177 = vld [vmem:[#allocation2 + $0x58] sm:$0xf]
    %v178 = vld [vmem:[#allocation2 + $0x5c] sm:$0xf]
    %v179 = vld [vmem:[%s2 + $0x3] sm:$0x1]
    %v180 = vlaneseq
    %v181 = vshrl.u32 %v180, 7
    %v182 = vsub.s32 0, %v181
    %v183 = vrot.slane %v179, %v182
    %v192 = vunpack.c.l.b16 %v171
    %v193 = vunpack.c.l.b16 %v172
    %v194 = vunpack.c.l.b16 %v173
    %v195 = vunpack.c.l.b16 %v174
    %v196 = vunpack.c.l.b16 %v175
    %v197 = vunpack.c.l.b16 %v176
    %v198 = vunpack.c.l.b16 %v177
    %v199 = vunpack.c.l.b16 %v178
    %v200 = vpack.c.b16 %v193, %v192
    %v201 = vpack.c.b16 %v195, %v194
    %v202 = vpack.c.b16 %v197, %v196
    %v203 = vpack.c.b16 %v199, %v198
    %vm208 = vcmask 523264
    %v210 = vsel %vm208, %v170, 0
    %212 = vmatprep.subr.bf16.mxu0 0
    %213 = vmatpush1.bf16.msra.mxu0 %v200
    %214 = vmatprep.subr.bf16.mxu0 0
    %215 = vmatpush1.bf16.msra.mxu0 %v201
    %216 = vmatprep.subr.bf16.mxu0 0
    %217 = vmatpush1.bf16.msra.mxu0 %v202
    %218 = vmatprep.subr.bf16.mxu0 0
    %219 = vmatpush1.bf16.msra.mxu0 %v203
    %220 = vmatprep.subr.bf16.mxu0 0
    %221 = vmatpush1.bf16.msra.mxu0 0
    %222 = vmatprep.subr.bf16.mxu0 0
    %223 = vmatpush1.bf16.msra.mxu0 0
    %224 = vmatprep.subr.bf16.mxu0 0
    %225 = vmatpush1.bf16.msra.mxu0 0
    %226 = vmatprep.subr.bf16.mxu0 0
    %227 = vmatpush1.bf16.msra.mxu0 0
    %228 = vmatprep.subr.bf16.mxu0 0
    %229 = vmatpush1.bf16.msra.mxu0 0
    %230 = vmatprep.subr.bf16.mxu0 0
    %231 = vmatpush1.bf16.msra.mxu0 0
    %232 = vmatprep.subr.bf16.mxu0 0
    %233 = vmatpush1.bf16.msra.mxu0 0
    %234 = vmatprep.subr.bf16.mxu0 0
    %235 = vmatpush1.bf16.msra.mxu0 0
    %236 = vmatprep.subr.bf16.mxu0 0
    %237 = vmatpush1.bf16.msra.mxu0 0
    %238 = vmatprep.subr.bf16.mxu0 0
    %239 = vmatpush1.bf16.msra.mxu0 0
    %240 = vmatprep.subr.bf16.mxu0 0
    %241 = vmatpush1.bf16.msra.mxu0 0
    %242 = vmatprep.subr.bf16.mxu0 0
    %243 = vmatpush1.bf16.msra.mxu0 0
    %244 = vmatprep.mubr.bf16.mxu0 0
    %245 = vmatmul.mubr.bf16.gmra.mrb[0].mxu0 %v210
    %v246 = vpop.f32.mrb[0].mxu0
    %v247 = vadd.f32 %v183, %v246
    %v248 = vpop.f32.mrb[0].mxu0
    %v249 = vpop.f32.mrb[0].mxu0
    %v250 = vpop.f32.mrb[0].mxu0
    %251 = vdwg.mxu0
    %v252 = vld [vmem:[%s2 + $0x4] sm:$0x1]
    %v253 = vld [vmem:[%s2 + $0x5] sm:$0x1]
    %v254 = vsel %vm142, %v247, 0.0
    %255 = vadd.xlane.f32.xlu0 %v254
    %v256 = vpop.xlane.xlu0 %255
    %v257 = vmul.f32 %v256, %v146
    %v258 = vsub.f32 %v247, %v257
    %v259 = vmul.f32 %v258, %v258
    %v260 = vsel %vm142, %v259, 0.0
    %261 = vadd.xlane.f32.xlu0 %v260
    %v262 = vpop.xlane.xlu0 %261
    %v263 = vmul.f32 %v262, %v146
    %v264 = vadd.f32 %v263, 1e-05
    %v265 = vrsqrt.pop %v264
    %v266 = vmul.f32 %v258, %v265
    %v267 = vlaneseq
    %v268 = vshrl.u32 %v267, 7
    %v269 = vsub.s32 0, %v268
    %v270 = vrot.slane %v252, %v269
    %v271 = vmul.f32 %v266, %v270
    %v272 = vlaneseq
    %v273 = vshrl.u32 %v272, 7
    %v274 = vsub.s32 0, %v273
    %v275 = vrot.slane %v253, %v274
    %v276 = vadd.f32 %v271, %v275
    %vm277 = vcmp.ge.f32.partialorder %v276, 0.0
    %v278 = vmul.f32 %v276, 0.2
    %v279 = vsel %vm277, %v276, %v278
    %v280 = vpack.c.bf16 %v279, %v279
    %v281 = vld [vmem:[#allocation2 + $0x60] sm:$0xf]
    %v282 = vld [vmem:[#allocation2 + $0x64] sm:$0xf]
    %v283 = vld [vmem:[#allocation2 + $0x68] sm:$0xf]
    %v284 = vld [vmem:[#allocation2 + $0x6c] sm:$0xf]
    %v285 = vld [vmem:[#allocation2 + $0x70] sm:$0xf]
    %v286 = vld [vmem:[#allocation2 + $0x74] sm:$0xf]
    %v287 = vld [vmem:[#allocation2 + $0x78] sm:$0xf]
    %v288 = vld [vmem:[#allocation2 + $0x7c] sm:$0xf]
    %v289 = vld [vmem:[%s2 + $0x6] sm:$0x1]
    %v290 = vlaneseq
    %v291 = vshrl.u32 %v290, 7
    %v292 = vsub.s32 0, %v291
    %v293 = vrot.slane %v289, %v292
    %v302 = vunpack.c.l.b16 %v281
    %v303 = vunpack.c.l.b16 %v282
    %v304 = vunpack.c.l.b16 %v283
    %v305 = vunpack.c.l.b16 %v284
    %v306 = vunpack.c.l.b16 %v285
    %v307 = vunpack.c.l.b16 %v286
    %v308 = vunpack.c.l.b16 %v287
    %v309 = vunpack.c.l.b16 %v288
    %v310 = vpack.c.b16 %v303, %v302
    %v311 = vpack.c.b16 %v305, %v304
    %v312 = vpack.c.b16 %v307, %v306
    %v313 = vpack.c.b16 %v309, %v308
    %v319 = vsel %vm208, %v280, 0
    %321 = vmatprep.subr.bf16.mxu0 0
    %322 = vmatpush1.bf16.msra.mxu0 %v310
    %323 = vmatprep.subr.bf16.mxu0 0
    %324 = vmatpush1.bf16.msra.mxu0 %v311
    %325 = vmatprep.subr.bf16.mxu0 0
    %326 = vmatpush1.bf16.msra.mxu0 %v312
    %327 = vmatprep.subr.bf16.mxu0 0
    %328 = vmatpush1.bf16.msra.mxu0 %v313
    %329 = vmatprep.subr.bf16.mxu0 0
    %330 = vmatpush1.bf16.msra.mxu0 0
    %331 = vmatprep.subr.bf16.mxu0 0
    %332 = vmatpush1.bf16.msra.mxu0 0
    %333 = vmatprep.subr.bf16.mxu0 0
    %334 = vmatpush1.bf16.msra.mxu0 0
    %335 = vmatprep.subr.bf16.mxu0 0
    %336 = vmatpush1.bf16.msra.mxu0 0
    %337 = vmatprep.subr.bf16.mxu0 0
    %338 = vmatpush1.bf16.msra.mxu0 0
    %339 = vmatprep.subr.bf16.mxu0 0
    %340 = vmatpush1.bf16.msra.mxu0 0
    %341 = vmatprep.subr.bf16.mxu0 0
    %342 = vmatpush1.bf16.msra.mxu0 0
    %343 = vmatprep.subr.bf16.mxu0 0
    %344 = vmatpush1.bf16.msra.mxu0 0
    %345 = vmatprep.subr.bf16.mxu0 0
    %346 = vmatpush1.bf16.msra.mxu0 0
    %347 = vmatprep.subr.bf16.mxu0 0
    %348 = vmatpush1.bf16.msra.mxu0 0
    %349 = vmatprep.subr.bf16.mxu0 0
    %350 = vmatpush1.bf16.msra.mxu0 0
    %351 = vmatprep.subr.bf16.mxu0 0
    %352 = vmatpush1.bf16.msra.mxu0 0
    %353 = vmatprep.mubr.bf16.mxu0 0
    %354 = vmatmul.mubr.bf16.gmra.mrb[0].mxu0 %v319
    %v355 = vpop.f32.mrb[0].mxu0
    %v356 = vadd.f32 %v293, %v355
    %v357 = vpop.f32.mrb[0].mxu0
    %v358 = vpop.f32.mrb[0].mxu0
    %v359 = vpop.f32.mrb[0].mxu0
    %360 = vdwg.mxu0
    %v361 = vld [vmem:[%s2 + $0x7] sm:$0x1]
    %v362 = vld [vmem:[%s2 + $0x8] sm:$0x1]
    %vm363 = vcmask 254976
    %v364 = vsel %vm363, %v356, 0.0
    %365 = vadd.xlane.f32.xlu0 %v364
    %v366 = vpop.xlane.xlu0 %365
    %v367 = vrcp.pop 32.0
    %v368 = vmul.f32 %v366, %v367
    %v369 = vsub.f32 %v356, %v368
    %v370 = vmul.f32 %v369, %v369
    %v371 = vsel %vm363, %v370, 0.0
    %372 = vadd.xlane.f32.xlu0 %v371
    %v373 = vpop.xlane.xlu0 %372
    %v374 = vmul.f32 %v373, %v367
    %v375 = vadd.f32 %v374, 1e-05
    %v376 = vrsqrt.pop %v375
    %v377 = vmul.f32 %v369, %v376
    %v378 = vlaneseq
    %v379 = vshrl.u32 %v378, 7
    %v380 = vsub.s32 0, %v379
    %v381 = vrot.slane %v361, %v380
    %v382 = vmul.f32 %v377, %v381
    %v383 = vlaneseq
    %v384 = vshrl.u32 %v383, 7
    %v385 = vsub.s32 0, %v384
    %v386 = vrot.slane %v362, %v385
    %v387 = vadd.f32 %v382, %v386
    %vm388 = vcmp.ge.f32.partialorder %v387, 0.0
    %v389 = vmul.f32 %v387, 0.2
    %v390 = vsel %vm388, %v387, %v389
    %v391 = vpack.c.bf16 %v390, %v390
    %v392 = vld [vmem:[#allocation2 + $0x80] sm:$0xf]
    %v393 = vld [vmem:[#allocation2 + $0x84] sm:$0xf]
    %v394 = vld [vmem:[#allocation2 + $0x88] sm:$0xf]
    %v395 = vld [vmem:[#allocation2 + $0x8c] sm:$0xf]
    %v396 = vld [vmem:[%s2 + $0x9] sm:$0x1]
    %v397 = vlaneseq
    %v398 = vshrl.u32 %v397, 7
    %v399 = vsub.s32 0, %v398
    %v400 = vrot.slane %v396, %v399
    %v405 = vunpack.c.l.b16 %v392
    %v406 = vunpack.c.l.b16 %v393
    %v407 = vunpack.c.l.b16 %v394
    %v408 = vunpack.c.l.b16 %v395
    %v409 = vpack.c.b16 %v406, %v405
    %v410 = vpack.c.b16 %v408, %v407
    %vm413 = vcmask 261120
    %v415 = vsel %vm413, %v391, 0
    %417 = vmatprep.subr.bf16.mxu0 0
    %418 = vmatpush1.bf16.msra.mxu0 %v409
    %419 = vmatprep.subr.bf16.mxu0 0
    %420 = vmatpush1.bf16.msra.mxu0 %v410
    %421 = vmatprep.subr.bf16.mxu0 0
    %422 = vmatpush1.bf16.msra.mxu0 0
    %423 = vmatprep.subr.bf16.mxu0 0
    %424 = vmatpush1.bf16.msra.mxu0 0
    %425 = vmatprep.subr.bf16.mxu0 0
    %426 = vmatpush1.bf16.msra.mxu0 0
    %427 = vmatprep.subr.bf16.mxu0 0
    %428 = vmatpush1.bf16.msra.mxu0 0
    %429 = vmatprep.subr.bf16.mxu0 0
    %430 = vmatpush1.bf16.msra.mxu0 0
    %431 = vmatprep.subr.bf16.mxu0 0
    %432 = vmatpush1.bf16.msra.mxu0 0
    %433 = vmatprep.subr.bf16.mxu0 0
    %434 = vmatpush1.bf16.msra.mxu0 0
    %435 = vmatprep.subr.bf16.mxu0 0
    %436 = vmatpush1.bf16.msra.mxu0 0
    %437 = vmatprep.subr.bf16.mxu0 0
    %438 = vmatpush1.bf16.msra.mxu0 0
    %439 = vmatprep.subr.bf16.mxu0 0
    %440 = vmatpush1.bf16.msra.mxu0 0
    %441 = vmatprep.subr.bf16.mxu0 0
    %442 = vmatpush1.bf16.msra.mxu0 0
    %443 = vmatprep.subr.bf16.mxu0 0
    %444 = vmatpush1.bf16.msra.mxu0 0
    %445 = vmatprep.subr.bf16.mxu0 0
    %446 = vmatpush1.bf16.msra.mxu0 0
    %447 = vmatprep.subr.bf16.mxu0 0
    %448 = vmatpush1.bf16.msra.mxu0 0
    %449 = vmatprep.mubr.bf16.mxu0 0
    %450 = vmatmul.mubr.bf16.gmra.mrb[0].mxu0 %v415
    %v451 = vpop.f32.mrb[0].mxu0
    %v452 = vadd.f32 %v400, %v451
    %v453 = vpop.f32.mrb[0].mxu0
    %v454 = vpop.f32.mrb[0].mxu0
    %v455 = vpop.f32.mrb[0].mxu0
    %456 = vdwg.mxu0
    %v457 = vld [vmem:[%s2 + $0xa] sm:$0x1]
    %v458 = vld [vmem:[%s2 + $0xb] sm:$0x1]
    %vm459 = vcmask 123904
    %v460 = vsel %vm459, %v452, 0.0
    %461 = vadd.xlane.f32.xlu0 %v460
    %v462 = vpop.xlane.xlu0 %461
    %v463 = vrcp.pop 16.0
    %v464 = vmul.f32 %v462, %v463
    %v465 = vsub.f32 %v452, %v464
    %v466 = vmul.f32 %v465, %v465
    %v467 = vsel %vm459, %v466, 0.0
    %468 = vadd.xlane.f32.xlu0 %v467
    %v469 = vpop.xlane.xlu0 %468
    %v470 = vmul.f32 %v469, %v463
    %v471 = vadd.f32 %v470, 1e-05
    %v472 = vrsqrt.pop %v471
    %v473 = vmul.f32 %v465, %v472
    %v474 = vlaneseq
    %v475 = vshrl.u32 %v474, 7
    %v476 = vsub.s32 0, %v475
    %v477 = vrot.slane %v457, %v476
    %v478 = vmul.f32 %v473, %v477
    %v479 = vlaneseq
    %v480 = vshrl.u32 %v479, 7
    %v481 = vsub.s32 0, %v480
    %v482 = vrot.slane %v458, %v481
    %v483 = vadd.f32 %v478, %v482
    %vm484 = vcmp.ge.f32.partialorder %v483, 0.0
    %v485 = vmul.f32 %v483, 0.2
    %v486 = vsel %vm484, %v483, %v485
    %v487 = vld [vmem:[%s2 + $0xc] sm:$0x1]
    %v488 = vld [vmem:[%s2 + $0xd] sm:$0x1]
    %490 = vrot.lane.b32.xlu0 %v452, 112
    %v491 = vpop.permute.xlu0 %490
    %v493 = vsel %vm459, %v491, 0.0
    %494 = vadd.xlane.f32.xlu0 %v493
    %v495 = vpop.xlane.xlu0 %494
    %v496 = vmul.f32 %v495, %v463
    %v497 = vsub.f32 %v452, %v496
    %v498 = vmul.f32 %v497, %v497
    %500 = vrot.lane.b32.xlu0 %v498, 112
    %v501 = vpop.permute.xlu0 %500
    %v503 = vsel %vm459, %v501, 0.0
    %504 = vadd.xlane.f32.xlu0 %v503
    %v505 = vpop.xlane.xlu0 %504
    %v506 = vmul.f32 %v505, %v463
    %v507 = vadd.f32 %v506, 1e-05
    %v508 = vrsqrt.pop %v507
    %v509 = vmul.f32 %v497, %v508
    %v510 = vlaneseq
    %v511 = vshrl.u32 %v510, 7
    %v512 = vsub.s32 0, %v511
    %v513 = vrot.slane %v487, %v512
    %515 = vrot.lane.b32.xlu0 %v513, 16
    %v516 = vpop.permute.xlu0 %515
    %v518 = vmul.f32 %v509, %v516
    %v519 = vlaneseq
    %v520 = vshrl.u32 %v519, 7
    %v521 = vsub.s32 0, %v520
    %v522 = vrot.slane %v488, %v521
    %524 = vrot.lane.b32.xlu0 %v522, 16
    %v525 = vpop.permute.xlu0 %524
    %v527 = vadd.f32 %v518, %v525
    %vm528 = vcmp.ge.f32.partialorder %v527, 0.0
    %v529 = vmul.f32 %v527, 0.2
    %v530 = vsel %vm528, %v527, %v529
    %v531 = vpack.c.bf16 %v486, %v486
    %v532 = vld [vmem:[#allocation2 + $0x90] sm:$0xf]
    %v533 = vld [vmem:[#allocation2 + $0x94] sm:$0xf]
    %v534 = vld [vmem:[%s2 + $0xe] sm:$0x1]
    %v535 = vlaneseq
    %v536 = vshrl.u32 %v535, 7
    %v537 = vsub.s32 0, %v536
    %v538 = vrot.slane %v534, %v537
    %v541 = vunpack.c.l.b16 %v532
    %v542 = vunpack.c.l.b16 %v533
    %v543 = vpack.c.b16 %v542, %v541
    %vm545 = vcmask 130048
    %v547 = vsel %vm545, %v531, 0
    %549 = vmatprep.subr.bf16.mxu0 0
    %550 = vmatpush1.bf16.msra.mxu0 %v543
    %551 = vmatprep.subr.bf16.mxu0 0
    %552 = vmatpush1.bf16.msra.mxu0 0
    %553 = vmatprep.subr.bf16.mxu0 0
    %554 = vmatpush1.bf16.msra.mxu0 0
    %555 = vmatprep.subr.bf16.mxu0 0
    %556 = vmatpush1.bf16.msra.mxu0 0
    %557 = vmatprep.subr.bf16.mxu0 0
    %558 = vmatpush1.bf16.msra.mxu0 0
    %559 = vmatprep.subr.bf16.mxu0 0
    %560 = vmatpush1.bf16.msra.mxu0 0
    %561 = vmatprep.subr.bf16.mxu0 0
    %562 = vmatpush1.bf16.msra.mxu0 0
    %563 = vmatprep.subr.bf16.mxu0 0
    %564 = vmatpush1.bf16.msra.mxu0 0
    %565 = vmatprep.subr.bf16.mxu0 0
    %566 = vmatpush1.bf16.msra.mxu0 0
    %567 = vmatprep.subr.bf16.mxu0 0
    %568 = vmatpush1.bf16.msra.mxu0 0
    %569 = vmatprep.subr.bf16.mxu0 0
    %570 = vmatpush1.bf16.msra.mxu0 0
    %571 = vmatprep.subr.bf16.mxu0 0
    %572 = vmatpush1.bf16.msra.mxu0 0
    %573 = vmatprep.subr.bf16.mxu0 0
    %574 = vmatpush1.bf16.msra.mxu0 0
    %575 = vmatprep.subr.bf16.mxu0 0
    %576 = vmatpush1.bf16.msra.mxu0 0
    %577 = vmatprep.subr.bf16.mxu0 0
    %578 = vmatpush1.bf16.msra.mxu0 0
    %579 = vmatprep.subr.bf16.mxu0 0
    %580 = vmatpush1.bf16.msra.mxu0 0
    %581 = vmatprep.mubr.bf16.mxu0 0
    %582 = vmatmul.mubr.bf16.gmra.mrb[0].mxu0 %v547
    %v583 = vpop.f32.mrb[0].mxu0
    %v584 = vadd.f32 %v538, %v583
    %v585 = vpop.f32.mrb[0].mxu0
    %v586 = vpop.f32.mrb[0].mxu0
    %v587 = vpop.f32.mrb[0].mxu0
    %588 = vdwg.mxu0
    %v589 = vpack.c.bf16 %v530, %v530
    %v590 = vld [vmem:[#allocation2 + $0x98] sm:$0xf]
    %v591 = vld [vmem:[#allocation2 + $0x9c] sm:$0xf]
    %v592 = vld [vmem:[%s2 + $0xf] sm:$0x1]
    %v593 = vlaneseq
    %v594 = vshrl.u32 %v593, 7
    %v595 = vsub.s32 0, %v594
    %v596 = vrot.slane %v592, %v595
    %598 = vrot.lane.b32.xlu0 %v589, 112
    %v599 = vpop.permute.xlu0 %598
    %v602 = vunpack.c.l.b16 %v590
    %v603 = vunpack.c.l.b16 %v591
    %v604 = vpack.c.b16 %v603, %v602
    %v607 = vsel %vm545, %v599, 0
    %609 = vmatprep.subr.bf16.mxu0 0
    %610 = vmatpush1.bf16.msra.mxu0 %v604
    %611 = vmatprep.subr.bf16.mxu0 0
    %612 = vmatpush1.bf16.msra.mxu0 0
    %613 = vmatprep.subr.bf16.mxu0 0
    %614 = vmatpush1.bf16.msra.mxu0 0
    %615 = vmatprep.subr.bf16.mxu0 0
    %616 = vmatpush1.bf16.msra.mxu0 0
    %617 = vmatprep.subr.bf16.mxu0 0
    %618 = vmatpush1.bf16.msra.mxu0 0
    %619 = vmatprep.subr.bf16.mxu0 0
    %620 = vmatpush1.bf16.msra.mxu0 0
    %621 = vmatprep.subr.bf16.mxu0 0
    %622 = vmatpush1.bf16.msra.mxu0 0
    %623 = vmatprep.subr.bf16.mxu0 0
    %624 = vmatpush1.bf16.msra.mxu0 0
    %625 = vmatprep.subr.bf16.mxu0 0
    %626 = vmatpush1.bf16.msra.mxu0 0
    %627 = vmatprep.subr.bf16.mxu0 0
    %628 = vmatpush1.bf16.msra.mxu0 0
    %629 = vmatprep.subr.bf16.mxu0 0
    %630 = vmatpush1.bf16.msra.mxu0 0
    %631 = vmatprep.subr.bf16.mxu0 0
    %632 = vmatpush1.bf16.msra.mxu0 0
    %633 = vmatprep.subr.bf16.mxu0 0
    %634 = vmatpush1.bf16.msra.mxu0 0
    %635 = vmatprep.subr.bf16.mxu0 0
    %636 = vmatpush1.bf16.msra.mxu0 0
    %637 = vmatprep.subr.bf16.mxu0 0
    %638 = vmatpush1.bf16.msra.mxu0 0
    %639 = vmatprep.subr.bf16.mxu0 0
    %640 = vmatpush1.bf16.msra.mxu0 0
    %641 = vmatprep.mubr.bf16.mxu0 0
    %642 = vmatmul.mubr.bf16.gmra.mrb[0].mxu0 %v607
    %v643 = vpop.f32.mrb[0].mxu0
    %v644 = vadd.f32 %v596, %v643
    %v645 = vpop.f32.mrb[0].mxu0
    %v646 = vpop.f32.mrb[0].mxu0
    %v647 = vpop.f32.mrb[0].mxu0
    %648 = vdwg.mxu0
    %v649 = vmul.f32 %v29, 0.05
    %651 = vrot.lane.b32.xlu0 %v649, 48
    %v652 = vpop.permute.xlu0 %651
    %v654 = vadd.f32 %v584, %v652
    %v655 = vpack.c.bf16 %v654, %v654
    %v656 = vld [vmem:[#allocation2 + $0xa0] sm:$0xf]
    %v657 = vld [vmem:[#allocation2 + $0xa4] sm:$0xf]
    %v658 = vld [vmem:[%s2 + $0x10] sm:$0x1]
    %v659 = vlaneseq
    %v660 = vshrl.u32 %v659, 7
    %v661 = vsub.s32 0, %v660
    %v662 = vrot.slane %v658, %v661
    %v665 = vunpack.c.l.b16 %v656
    %v666 = vunpack.c.l.b16 %v657
    %v667 = vpack.c.b16 %v666, %v665
    %v670 = vsel %vm545, %v655, 0
    %672 = vmatprep.subr.bf16.mxu0 0
    %673 = vmatpush1.bf16.msra.mxu0 %v667
    %674 = vmatprep.subr.bf16.mxu0 0
    %675 = vmatpush1.bf16.msra.mxu0 0
    %676 = vmatprep.subr.bf16.mxu0 0
    %677 = vmatpush1.bf16.msra.mxu0 0
    %678 = vmatprep.subr.bf16.mxu0 0
    %679 = vmatpush1.bf16.msra.mxu0 0
    %680 = vmatprep.subr.bf16.mxu0 0
    %681 = vmatpush1.bf16.msra.mxu0 0
    %682 = vmatprep.subr.bf16.mxu0 0
    %683 = vmatpush1.bf16.msra.mxu0 0
    %684 = vmatprep.subr.bf16.mxu0 0
    %685 = vmatpush1.bf16.msra.mxu0 0
    %686 = vmatprep.subr.bf16.mxu0 0
    %687 = vmatpush1.bf16.msra.mxu0 0
    %688 = vmatprep.subr.bf16.mxu0 0
    %689 = vmatpush1.bf16.msra.mxu0 0
    %690 = vmatprep.subr.bf16.mxu0 0
    %691 = vmatpush1.bf16.msra.mxu0 0
    %692 = vmatprep.subr.bf16.mxu0 0
    %693 = vmatpush1.bf16.msra.mxu0 0
    %694 = vmatprep.subr.bf16.mxu0 0
    %695 = vmatpush1.bf16.msra.mxu0 0
    %696 = vmatprep.subr.bf16.mxu0 0
    %697 = vmatpush1.bf16.msra.mxu0 0
    %698 = vmatprep.subr.bf16.mxu0 0
    %699 = vmatpush1.bf16.msra.mxu0 0
    %700 = vmatprep.subr.bf16.mxu0 0
    %701 = vmatpush1.bf16.msra.mxu0 0
    %702 = vmatprep.subr.bf16.mxu0 0
    %703 = vmatpush1.bf16.msra.mxu0 0
    %704 = vmatprep.mubr.bf16.mxu0 0
    %705 = vmatmul.mubr.bf16.gmra.mrb[0].mxu0 %v670
    %v706 = vpop.f32.mrb[0].mxu0
    %v707 = vadd.f32 %v662, %v706
    %v708 = vpop.f32.mrb[0].mxu0
    %v709 = vpop.f32.mrb[0].mxu0
    %v710 = vpop.f32.mrb[0].mxu0
    %711 = vdwg.mxu0
    %v712 = vld [vmem:[%s2 + $0x11] sm:$0x1]
    %v713 = vld [vmem:[%s2 + $0x12] sm:$0x1]
    %vm714 = vcmask 25600
    %v715 = vsel %vm714, %v707, 0.0
    %716 = vadd.xlane.f32.xlu0 %v715
    %v717 = vpop.xlane.xlu0 %716
    %v718 = vrcp.pop 4.0
    %v719 = vmul.f32 %v717, %v718
    %v720 = vsub.f32 %v707, %v719
    %v721 = vmul.f32 %v720, %v720
    %v722 = vsel %vm714, %v721, 0.0
    %723 = vadd.xlane.f32.xlu0 %v722
    %v724 = vpop.xlane.xlu0 %723
    %v725 = vmul.f32 %v724, %v718
    %v726 = vadd.f32 %v725, 1e-05
    %v727 = vrsqrt.pop %v726
    %v728 = vmul.f32 %v720, %v727
    %v729 = vlaneseq
    %v730 = vshrl.u32 %v729, 7
    %v731 = vsub.s32 0, %v730
    %v732 = vrot.slane %v712, %v731
    %v733 = vmul.f32 %v728, %v732
    %v734 = vlaneseq
    %v735 = vshrl.u32 %v734, 7
    %v736 = vsub.s32 0, %v735
    %v737 = vrot.slane %v713, %v736
    %v738 = vadd.f32 %v733, %v737
    %vm739 = vcmp.ge.f32.partialorder %v738, 0.0
    %v740 = vmul.f32 %v738, 0.2
    %v741 = vsel %vm739, %v738, %v740
    %v742 = vpack.c.bf16 %v741, %v741
    %v743 = vld [vmem:[#allocation2 + $0xa8] sm:$0x3]
    %v744 = vld [vmem:[%s2 + $0x13] sm:$0x1]
    %v745 = vlaneseq
    %v746 = vshrl.u32 %v745, 7
    %v747 = vsub.s32 0, %v746
    %v748 = vrot.slane %v744, %v747
    %vm749 = vcmask 31744
    %v751 = vsel %vm749, %v742, 0
    %vm753 = vcmask 1041408
    %v755 = vsel %vm753, %v743, 0
    %757 = vmatprep.subr.bf16.mxu0 0
    %758 = vmatpush1.bf16.msra.mxu0 %v755
    %759 = vmatprep.subr.bf16.mxu0 0
    %760 = vmatpush1.bf16.msra.mxu0 0
    %761 = vmatprep.subr.bf16.mxu0 0
    %762 = vmatpush1.bf16.msra.mxu0 0
    %763 = vmatprep.subr.bf16.mxu0 0
    %764 = vmatpush1.bf16.msra.mxu0 0
    %765 = vmatprep.subr.bf16.mxu0 0
    %766 = vmatpush1.bf16.msra.mxu0 0
    %767 = vmatprep.subr.bf16.mxu0 0
    %768 = vmatpush1.bf16.msra.mxu0 0
    %769 = vmatprep.subr.bf16.mxu0 0
    %770 = vmatpush1.bf16.msra.mxu0 0
    %771 = vmatprep.subr.bf16.mxu0 0
    %772 = vmatpush1.bf16.msra.mxu0 0
    %773 = vmatprep.subr.bf16.mxu0 0
    %774 = vmatpush1.bf16.msra.mxu0 0
    %775 = vmatprep.subr.bf16.mxu0 0
    %776 = vmatpush1.bf16.msra.mxu0 0
    %777 = vmatprep.subr.bf16.mxu0 0
    %778 = vmatpush1.bf16.msra.mxu0 0
    %779 = vmatprep.subr.bf16.mxu0 0
    %780 = vmatpush1.bf16.msra.mxu0 0
    %781 = vmatprep.subr.bf16.mxu0 0
    %782 = vmatpush1.bf16.msra.mxu0 0
    %783 = vmatprep.subr.bf16.mxu0 0
    %784 = vmatpush1.bf16.msra.mxu0 0
    %785 = vmatprep.subr.bf16.mxu0 0
    %786 = vmatpush1.bf16.msra.mxu0 0
    %787 = vmatprep.subr.bf16.mxu0 0
    %788 = vmatpush1.bf16.msra.mxu0 0
    %789 = vmatprep.mubr.bf16.mxu0 0
    %790 = vmatmul.mubr.bf16.gmra.mrb[0].mxu0 %v751
    %v791 = vpop.f32.mrb[0].mxu0
    %v792 = vadd.f32 %v748, %v791
    %v793 = vpop.f32.mrb[0].mxu0
    %v794 = vpop.f32.mrb[0].mxu0
    %v795 = vpop.f32.mrb[0].mxu0
    %796 = vdwg.mxu0
    %v797 = vld [vmem:[%s2 + $0x14] sm:$0x1]
    %v798 = vld [vmem:[%s2 + $0x15] sm:$0x1]
    %vm799 = vcmask 58368
    %v800 = vsel %vm799, %v792, 0.0
    %801 = vadd.xlane.f32.xlu0 %v800
    %v802 = vpop.xlane.xlu0 %801
    %v803 = vrcp.pop 8.0
    %v804 = vmul.f32 %v802, %v803
    %v805 = vsub.f32 %v792, %v804
    %v806 = vmul.f32 %v805, %v805
    %v807 = vsel %vm799, %v806, 0.0
    %808 = vadd.xlane.f32.xlu0 %v807
    %v809 = vpop.xlane.xlu0 %808
    %v810 = vmul.f32 %v809, %v803
    %v811 = vadd.f32 %v810, 1e-05
    %v812 = vrsqrt.pop %v811
    %v813 = vmul.f32 %v805, %v812
    %v814 = vlaneseq
    %v815 = vshrl.u32 %v814, 7
    %v816 = vsub.s32 0, %v815
    %v817 = vrot.slane %v797, %v816
    %v818 = vmul.f32 %v813, %v817
    %v819 = vlaneseq
    %v820 = vshrl.u32 %v819, 7
    %v821 = vsub.s32 0, %v820
    %v822 = vrot.slane %v798, %v821
    %v823 = vadd.f32 %v818, %v822
    %vm824 = vcmp.ge.f32.partialorder %v823, 0.0
    %v825 = vmul.f32 %v823, 0.2
    %v826 = vsel %vm824, %v823, %v825
    %v827 = vpack.c.bf16 %v826, %v826
    %v828 = vld [vmem:[#allocation2 + $0xb0] sm:$0xf]
    %v829 = vld [vmem:[%s2 + $0x16] sm:$0x1]
    %v830 = vlaneseq
    %v831 = vshrl.u32 %v830, 7
    %v832 = vsub.s32 0, %v831
    %v833 = vrot.slane %v829, %v832
    %vm834 = vcmask 64512
    %v836 = vsel %vm834, %v827, 0
    %vm838 = vcmask 1043456
    %v840 = vsel %vm838, %v828, 0
    %842 = vmatprep.subr.bf16.mxu0 0
    %843 = vmatpush1.bf16.msra.mxu0 %v840
    %844 = vmatprep.subr.bf16.mxu0 0
    %845 = vmatpush1.bf16.msra.mxu0 0
    %846 = vmatprep.subr.bf16.mxu0 0
    %847 = vmatpush1.bf16.msra.mxu0 0
    %848 = vmatprep.subr.bf16.mxu0 0
    %849 = vmatpush1.bf16.msra.mxu0 0
    %850 = vmatprep.subr.bf16.mxu0 0
    %851 = vmatpush1.bf16.msra.mxu0 0
    %852 = vmatprep.subr.bf16.mxu0 0
    %853 = vmatpush1.bf16.msra.mxu0 0
    %854 = vmatprep.subr.bf16.mxu0 0
    %855 = vmatpush1.bf16.msra.mxu0 0
    %856 = vmatprep.subr.bf16.mxu0 0
    %857 = vmatpush1.bf16.msra.mxu0 0
    %858 = vmatprep.subr.bf16.mxu0 0
    %859 = vmatpush1.bf16.msra.mxu0 0
    %860 = vmatprep.subr.bf16.mxu0 0
    %861 = vmatpush1.bf16.msra.mxu0 0
    %862 = vmatprep.subr.bf16.mxu0 0
    %863 = vmatpush1.bf16.msra.mxu0 0
    %864 = vmatprep.subr.bf16.mxu0 0
    %865 = vmatpush1.bf16.msra.mxu0 0
    %866 = vmatprep.subr.bf16.mxu0 0
    %867 = vmatpush1.bf16.msra.mxu0 0
    %868 = vmatprep.subr.bf16.mxu0 0
    %869 = vmatpush1.bf16.msra.mxu0 0
    %870 = vmatprep.subr.bf16.mxu0 0
    %871 = vmatpush1.bf16.msra.mxu0 0
    %872 = vmatprep.subr.bf16.mxu0 0
    %873 = vmatpush1.bf16.msra.mxu0 0
    %874 = vmatprep.mubr.bf16.mxu0 0
    %875 = vmatmul.mubr.bf16.gmra.mrb[0].mxu0 %v836
    %v876 = vpop.f32.mrb[0].mxu0
    %v877 = vadd.f32 %v833, %v876
    %v878 = vpop.f32.mrb[0].mxu0
    %v879 = vpop.f32.mrb[0].mxu0
    %v880 = vpop.f32.mrb[0].mxu0
    %881 = vdwg.mxu0
    %v882 = vld [vmem:[%s2 + $0x17] sm:$0x1]
    %v883 = vld [vmem:[%s2 + $0x18] sm:$0x1]
    %v884 = vsel %vm459, %v877, 0.0
    %885 = vadd.xlane.f32.xlu0 %v884
    %v886 = vpop.xlane.xlu0 %885
    %v887 = vmul.f32 %v886, %v463
    %v888 = vsub.f32 %v877, %v887
    %v889 = vmul.f32 %v888, %v888
    %v890 = vsel %vm459, %v889, 0.0
    %891 = vadd.xlane.f32.xlu0 %v890
    %v892 = vpop.xlane.xlu0 %891
    %v893 = vmul.f32 %v892, %v463
    %v894 = vadd.f32 %v893, 1e-05
    %v895 = vrsqrt.pop %v894
    %v896 = vmul.f32 %v888, %v895
    %v897 = vlaneseq
    %v898 = vshrl.u32 %v897, 7
    %v899 = vsub.s32 0, %v898
    %v900 = vrot.slane %v882, %v899
    %v901 = vmul.f32 %v896, %v900
    %v902 = vlaneseq
    %v903 = vshrl.u32 %v902, 7
    %v904 = vsub.s32 0, %v903
    %v905 = vrot.slane %v883, %v904
    %v906 = vadd.f32 %v901, %v905
    %vm907 = vcmp.ge.f32.partialorder %v906, 0.0
    %v908 = vmul.f32 %v906, 0.2
    %v909 = vsel %vm907, %v906, %v908
    %v910 = vpack.c.bf16 %v909, %v909
    %v911 = vld [vmem:[#allocation2 + $0xb8] sm:$0xf]
    %v912 = vld [vmem:[#allocation2 + $0xbc] sm:$0xf]
    %v913 = vld [vmem:[%s2 + $0x19] sm:$0x1]
    %v914 = vlaneseq
    %v915 = vshrl.u32 %v914, 7
    %v916 = vsub.s32 0, %v915
    %v917 = vrot.slane %v913, %v916
    %v920 = vunpack.c.l.b16 %v911
    %v921 = vunpack.c.l.b16 %v912
    %v922 = vpack.c.b16 %v921, %v920
    %v925 = vsel %vm545, %v910, 0
    %927 = vmatprep.subr.bf16.mxu0 0
    %928 = vmatpush1.bf16.msra.mxu0 %v922
    %929 = vmatprep.subr.bf16.mxu0 0
    %930 = vmatpush1.bf16.msra.mxu0 0
    %931 = vmatprep.subr.bf16.mxu0 0
    %932 = vmatpush1.bf16.msra.mxu0 0
    %933 = vmatprep.subr.bf16.mxu0 0
    %934 = vmatpush1.bf16.msra.mxu0 0
    %935 = vmatprep.subr.bf16.mxu0 0
    %936 = vmatpush1.bf16.msra.mxu0 0
    %937 = vmatprep.subr.bf16.mxu0 0
    %938 = vmatpush1.bf16.msra.mxu0 0
    %939 = vmatprep.subr.bf16.mxu0 0
    %940 = vmatpush1.bf16.msra.mxu0 0
    %941 = vmatprep.subr.bf16.mxu0 0
    %942 = vmatpush1.bf16.msra.mxu0 0
    %943 = vmatprep.subr.bf16.mxu0 0
    %944 = vmatpush1.bf16.msra.mxu0 0
    %945 = vmatprep.subr.bf16.mxu0 0
    %946 = vmatpush1.bf16.msra.mxu0 0
    %947 = vmatprep.subr.bf16.mxu0 0
    %948 = vmatpush1.bf16.msra.mxu0 0
    %949 = vmatprep.subr.bf16.mxu0 0
    %950 = vmatpush1.bf16.msra.mxu0 0
    %951 = vmatprep.subr.bf16.mxu0 0
    %952 = vmatpush1.bf16.msra.mxu0 0
    %953 = vmatprep.subr.bf16.mxu0 0
    %954 = vmatpush1.bf16.msra.mxu0 0
    %955 = vmatprep.subr.bf16.mxu0 0
    %956 = vmatpush1.bf16.msra.mxu0 0
    %957 = vmatprep.subr.bf16.mxu0 0
    %958 = vmatpush1.bf16.msra.mxu0 0
    %959 = vmatprep.mubr.bf16.mxu0 0
    %960 = vmatmul.mubr.bf16.gmra.mrb[0].mxu0 %v925
    %v961 = vpop.f32.mrb[0].mxu0
    %v962 = vadd.f32 %v917, %v961
    %v963 = vpop.f32.mrb[0].mxu0
    %v964 = vpop.f32.mrb[0].mxu0
    %v965 = vpop.f32.mrb[0].mxu0
    %966 = vdwg.mxu0
    %v967 = vld [vmem:[%s2 + $0x1a] sm:$0x1]
    %v968 = vld [vmem:[%s2 + $0x1b] sm:$0x1]
    %v969 = vsel %vm363, %v962, 0.0
    %970 = vadd.xlane.f32.xlu0 %v969
    %v971 = vpop.xlane.xlu0 %970
    %v972 = vmul.f32 %v971, %v367
    %v973 = vsub.f32 %v962, %v972
    %v974 = vmul.f32 %v973, %v973
    %v975 = vsel %vm363, %v974, 0.0
    %976 = vadd.xlane.f32.xlu0 %v975
    %v977 = vpop.xlane.xlu0 %976
    %v978 = vmul.f32 %v977, %v367
    %v979 = vadd.f32 %v978, 1e-05
    %v980 = vrsqrt.pop %v979
    %v981 = vmul.f32 %v973, %v980
    %v982 = vlaneseq
    %v983 = vshrl.u32 %v982, 7
    %v984 = vsub.s32 0, %v983
    %v985 = vrot.slane %v967, %v984
    %v986 = vmul.f32 %v981, %v985
    %v987 = vlaneseq
    %v988 = vshrl.u32 %v987, 7
    %v989 = vsub.s32 0, %v988
    %v990 = vrot.slane %v968, %v989
    %v991 = vadd.f32 %v986, %v990
    %vm992 = vcmp.ge.f32.partialorder %v991, 0.0
    %v993 = vmul.f32 %v991, 0.2
    %v994 = vsel %vm992, %v991, %v993
    %v995 = vpack.c.bf16 %v994, %v994
    %v996 = vld [vmem:[#allocation2 + $0xc0] sm:$0xf]
    %v997 = vld [vmem:[#allocation2 + $0xc4] sm:$0xf]
    %v998 = vld [vmem:[#allocation2 + $0xc8] sm:$0xf]
    %v999 = vld [vmem:[#allocation2 + $0xcc] sm:$0xf]
    %v1000 = vld [vmem:[%s2 + $0x1c] sm:$0x1]
    %v1001 = vlaneseq
    %v1002 = vshrl.u32 %v1001, 7
    %v1003 = vsub.s32 0, %v1002
    %v1004 = vrot.slane %v1000, %v1003
    %v1009 = vunpack.c.l.b16 %v996
    %v1010 = vunpack.c.l.b16 %v997
    %v1011 = vunpack.c.l.b16 %v998
    %v1012 = vunpack.c.l.b16 %v999
    %v1013 = vpack.c.b16 %v1010, %v1009
    %v1014 = vpack.c.b16 %v1012, %v1011
    %v1018 = vsel %vm413, %v995, 0
    %1020 = vmatprep.subr.bf16.mxu0 0
    %1021 = vmatpush1.bf16.msra.mxu0 %v1013
    %1022 = vmatprep.subr.bf16.mxu0 0
    %1023 = vmatpush1.bf16.msra.mxu0 %v1014
    %1024 = vmatprep.subr.bf16.mxu0 0
    %1025 = vmatpush1.bf16.msra.mxu0 0
    %1026 = vmatprep.subr.bf16.mxu0 0
    %1027 = vmatpush1.bf16.msra.mxu0 0
    %1028 = vmatprep.subr.bf16.mxu0 0
    %1029 = vmatpush1.bf16.msra.mxu0 0
    %1030 = vmatprep.subr.bf16.mxu0 0
    %1031 = vmatpush1.bf16.msra.mxu0 0
    %1032 = vmatprep.subr.bf16.mxu0 0
    %1033 = vmatpush1.bf16.msra.mxu0 0
    %1034 = vmatprep.subr.bf16.mxu0 0
    %1035 = vmatpush1.bf16.msra.mxu0 0
    %1036 = vmatprep.subr.bf16.mxu0 0
    %1037 = vmatpush1.bf16.msra.mxu0 0
    %1038 = vmatprep.subr.bf16.mxu0 0
    %1039 = vmatpush1.bf16.msra.mxu0 0
    %1040 = vmatprep.subr.bf16.mxu0 0
    %1041 = vmatpush1.bf16.msra.mxu0 0
    %1042 = vmatprep.subr.bf16.mxu0 0
    %1043 = vmatpush1.bf16.msra.mxu0 0
    %1044 = vmatprep.subr.bf16.mxu0 0
    %1045 = vmatpush1.bf16.msra.mxu0 0
    %1046 = vmatprep.subr.bf16.mxu0 0
    %1047 = vmatpush1.bf16.msra.mxu0 0
    %1048 = vmatprep.subr.bf16.mxu0 0
    %1049 = vmatpush1.bf16.msra.mxu0 0
    %1050 = vmatprep.subr.bf16.mxu0 0
    %1051 = vmatpush1.bf16.msra.mxu0 0
    %1052 = vmatprep.mubr.bf16.mxu0 0
    %1053 = vmatmul.mubr.bf16.gmra.mrb[0].mxu0 %v1018
    %v1054 = vpop.f32.mrb[0].mxu0
    %v1055 = vadd.f32 %v1004, %v1054
    %v1056 = vpop.f32.mrb[0].mxu0
    %v1057 = vpop.f32.mrb[0].mxu0
    %v1058 = vpop.f32.mrb[0].mxu0
    %1059 = vdwg.mxu0
    %v1060 = vmul.f32 %v584, 0.5
    %v1061 = vmul.f32 %v1060, 1.442695
    %v1062 = vpow.pop %v1061
    %1064 = vrot.lane.b32.xlu0 %v29, 80
    %v1065 = vpop.permute.xlu0 %1064
    %v1067 = vmul.f32 %v1062, %v1065
    %1069 = vrot.lane.b32.xlu0 %v1067, 112
    %v1070 = vpop.permute.xlu0 %1069
    %v1072 = vadd.f32 %v584, %v1070
    %v1073 = vsel %vm753, %v644, -inf
    %1074 = vmax.xlane.f32.xlu0 %v1073
    %v1075 = vpop.xlane.xlu0 %1074
    %v1076 = vlaneseq
    %v1077 = vand.u32 %v1076, 127
    %vm1078 = vcmp.eq.f32.partialorder %v644, %v1075
    %v1079 = vsel %vm1078, %v1077, 128
    %v1080 = vsel %vm753, %v1079, 2147483647
    %v1081 = vand.u32 %v1080, 65535
    %v1082 = vshra.s32 %v1080, 16
    %v1083 = vcvt.s32.f32 %v1081
    %v1084 = vcvt.s32.f32 %v1082
    %1085 = vmin.xlane.f32.xlu0 %v1084
    %v1086 = vpop.xlane.xlu0 %1085
    %vm1087 = vcmp.eq.f32.partialorder %v1084, %v1086
    %v1088 = vsel %vm1087, %v1083, inf
    %1089 = vmin.xlane.f32.xlu0 %v1088
    %v1090 = vpop.xlane.xlu0 %1089
    %v1091 = vcvt.f32.s32 %v1090
    %v1092 = vcvt.f32.s32 %v1086
    %v1093 = vshll.u32 %v1092, 16
    %v1094 = vadd.s32 %v1093, %v1091
    %vm1095 = vcmp.eq.s32.totalorder %v1077, %v1094
    %v1096 = vsel %vm1095, 1, 0
    %v1097 = vcvt.s32.f32 %v1096
    %v1098 = vpack.c.bf16 %v1072, %v1072
    %v1099 = vld [vmem:[#allocation2 + $0xd0] sm:$0xf]
    %v1100 = vld [vmem:[#allocation2 + $0xd4] sm:$0xf]
    %v1101 = vpack.c.bf16 %v1097, %v1097
    %v1102 = vld [vmem:[#allocation2 + $0xd8] sm:$0xf]
    %v1103 = vld [vmem:[#allocation2 + $0xdc] sm:$0xf]
    %v1104 = vld [vmem:[#allocation2 + $0xe0] sm:$0xf]
    %v1105 = vld [vmem:[#allocation2 + $0xe4] sm:$0xf]
    %v1106 = vld [vmem:[#allocation2 + $0xe8] sm:$0xf]
    %v1107 = vld [vmem:[#allocation2 + $0xec] sm:$0xf]
    %v1108 = vld [vmem:[#allocation2 + $0xf0] sm:$0xf]
    %v1109 = vld [vmem:[#allocation2 + $0xf4] sm:$0xf]
    %v1110 = vld [vmem:[#allocation2 + $0xf8] sm:$0xf]
    %v1111 = vld [vmem:[#allocation2 + $0xfc] sm:$0xf]
    %v1112 = vld [vmem:[#allocation2 + $0x100] sm:$0xf]
    %v1113 = vld [vmem:[#allocation2 + $0x104] sm:$0xf]
    %v1114 = vld [vmem:[#allocation2 + $0x108] sm:$0xf]
    %v1115 = vld [vmem:[#allocation2 + $0x10c] sm:$0xf]
    %v1116 = vld [vmem:[#allocation2 + $0x110] sm:$0xf]
    %v1117 = vld [vmem:[#allocation2 + $0x114] sm:$0xf]
    %v1134 = vunpack.c.l.b16 %v1102
    %v1135 = vunpack.c.l.b16 %v1103
    %v1136 = vunpack.c.l.b16 %v1104
    %v1137 = vunpack.c.l.b16 %v1105
    %v1138 = vunpack.c.l.b16 %v1106
    %v1139 = vunpack.c.l.b16 %v1107
    %v1140 = vunpack.c.l.b16 %v1108
    %v1141 = vunpack.c.l.b16 %v1109
    %v1142 = vunpack.c.l.b16 %v1110
    %v1143 = vunpack.c.l.b16 %v1111
    %v1144 = vunpack.c.l.b16 %v1112
    %v1145 = vunpack.c.l.b16 %v1113
    %v1146 = vunpack.c.l.b16 %v1114
    %v1147 = vunpack.c.l.b16 %v1115
    %v1148 = vunpack.c.l.b16 %v1116
    %v1149 = vunpack.c.l.b16 %v1117
    %v1150 = vpack.c.b16 %v1135, %v1134
    %v1151 = vpack.c.b16 %v1137, %v1136
    %v1152 = vpack.c.b16 %v1139, %v1138
    %v1153 = vpack.c.b16 %v1141, %v1140
    %v1154 = vpack.c.b16 %v1143, %v1142
    %v1155 = vpack.c.b16 %v1145, %v1144
    %v1156 = vpack.c.b16 %v1147, %v1146
    %v1157 = vpack.c.b16 %v1149, %v1148
    %1166 = vmatprep.subr.bf16.mxu0 0
    %1167 = vmatpush1.bf16.msra.mxu0 %v1150
    %1168 = vmatprep.subr.bf16.mxu0 0
    %1169 = vmatpush1.bf16.msra.mxu0 %v1151
    %1170 = vmatprep.subr.bf16.mxu0 0
    %1171 = vmatpush1.bf16.msra.mxu0 %v1152
    %1172 = vmatprep.subr.bf16.mxu0 0
    %1173 = vmatpush1.bf16.msra.mxu0 %v1153
    %1174 = vmatprep.subr.bf16.mxu0 0
    %1175 = vmatpush1.bf16.msra.mxu0 %v1154
    %1176 = vmatprep.subr.bf16.mxu0 0
    %1177 = vmatpush1.bf16.msra.mxu0 %v1155
    %1178 = vmatprep.subr.bf16.mxu0 0
    %1179 = vmatpush1.bf16.msra.mxu0 %v1156
    %1180 = vmatprep.subr.bf16.mxu0 0
    %1181 = vmatpush1.bf16.msra.mxu0 %v1157
    %1182 = vmatprep.subr.bf16.mxu0 0
    %1183 = vmatpush1.bf16.msra.mxu0 0
    %1184 = vmatprep.subr.bf16.mxu0 0
    %1185 = vmatpush1.bf16.msra.mxu0 0
    %1186 = vmatprep.subr.bf16.mxu0 0
    %1187 = vmatpush1.bf16.msra.mxu0 0
    %1188 = vmatprep.subr.bf16.mxu0 0
    %1189 = vmatpush1.bf16.msra.mxu0 0
    %1190 = vmatprep.subr.bf16.mxu0 0
    %1191 = vmatpush1.bf16.msra.mxu0 0
    %1192 = vmatprep.subr.bf16.mxu0 0
    %1193 = vmatpush1.bf16.msra.mxu0 0
    %1194 = vmatprep.subr.bf16.mxu0 0
    %1195 = vmatpush1.bf16.msra.mxu0 0
    %1196 = vmatprep.subr.bf16.mxu0 0
    %1197 = vmatpush1.bf16.msra.mxu0 0
    %1198 = vmatprep.mubr.bf16.mxu0 0
    %1199 = vmatmul.mubr.bf16.gmra.mrb[0].mxu0 %v1101
    %v1200 = vpop.f32.mrb[0].mxu0
    %v1201 = vadd.f32 0.0, %v1200
    %v1202 = vpop.f32.mrb[0].mxu0
    %v1203 = vpop.f32.mrb[0].mxu0
    %v1204 = vpop.f32.mrb[0].mxu0
    %1205 = vdwg.mxu0
    %v1208 = vunpack.c.l.b16 %v1099
    %v1209 = vunpack.c.l.b16 %v1100
    %v1210 = vpack.c.b16 %v1209, %v1208
    %v1213 = vsel %vm545, %v1098, 0
    %1215 = vmatprep.subr.bf16.mxu0 0
    %1216 = vmatpush1.bf16.msra.mxu0 %v1210
    %1217 = vmatprep.subr.bf16.mxu0 0
    %1218 = vmatpush1.bf16.msra.mxu0 0
    %1219 = vmatprep.subr.bf16.mxu0 0
    %1220 = vmatpush1.bf16.msra.mxu0 0
    %1221 = vmatprep.subr.bf16.mxu0 0
    %1222 = vmatpush1.bf16.msra.mxu0 0
    %1223 = vmatprep.subr.bf16.mxu0 0
    %1224 = vmatpush1.bf16.msra.mxu0 0
    %1225 = vmatprep.subr.bf16.mxu0 0
    %1226 = vmatpush1.bf16.msra.mxu0 0
    %1227 = vmatprep.subr.bf16.mxu0 0
    %1228 = vmatpush1.bf16.msra.mxu0 0
    %1229 = vmatprep.subr.bf16.mxu0 0
    %1230 = vmatpush1.bf16.msra.mxu0 0
    %1231 = vmatprep.subr.bf16.mxu0 0
    %1232 = vmatpush1.bf16.msra.mxu0 0
    %1233 = vmatprep.subr.bf16.mxu0 0
    %1234 = vmatpush1.bf16.msra.mxu0 0
    %1235 = vmatprep.subr.bf16.mxu0 0
    %1236 = vmatpush1.bf16.msra.mxu0 0
    %1237 = vmatprep.subr.bf16.mxu0 0
    %1238 = vmatpush1.bf16.msra.mxu0 0
    %1239 = vmatprep.subr.bf16.mxu0 0
    %1240 = vmatpush1.bf16.msra.mxu0 0
    %1241 = vmatprep.subr.bf16.mxu0 0
    %1242 = vmatpush1.bf16.msra.mxu0 0
    %1243 = vmatprep.subr.bf16.mxu0 0
    %1244 = vmatpush1.bf16.msra.mxu0 0
    %1245 = vmatprep.subr.bf16.mxu0 0
    %1246 = vmatpush1.bf16.msra.mxu0 0
    %1247 = vmatprep.mubr.bf16.mxu0 0
    %1248 = vmatmul.mubr.bf16.gmra.mrb[0].mxu0 %v1213
    %v1249 = vpop.f32.mrb[0].mxu0
    %v1250 = vadd.f32 %v1201, %v1249
    %v1251 = vpop.f32.mrb[0].mxu0
    %v1252 = vpop.f32.mrb[0].mxu0
    %v1253 = vpop.f32.mrb[0].mxu0
    %1254 = vdwg.mxu0
    %v1255 = vld [vmem:[%s2 + $0x1d] sm:$0x1]
    %v1256 = vlaneseq
    %v1257 = vshrl.u32 %v1256, 7
    %v1258 = vsub.s32 0, %v1257
    %v1259 = vrot.slane %v1255, %v1258
    %v1260 = vadd.f32 %v1250, %v1259
    %v1261 = vld [vmem:[%s2 + $0x1e] sm:$0x1]
    %v1262 = vld [vmem:[%s2 + $0x1f] sm:$0x1]
    %v1263 = vsel %vm363, %v1260, 0.0
    %1264 = vadd.xlane.f32.xlu0 %v1263
    %v1265 = vpop.xlane.xlu0 %1264
    %v1266 = vmul.f32 %v1265, %v367
    %v1267 = vsub.f32 %v1260, %v1266
    %v1268 = vmul.f32 %v1267, %v1267
    %v1269 = vsel %vm363, %v1268, 0.0
    %1270 = vadd.xlane.f32.xlu0 %v1269
    %v1271 = vpop.xlane.xlu0 %1270
    %v1272 = vmul.f32 %v1271, %v367
    %v1273 = vadd.f32 %v1272, 1e-05
    %v1274 = vrsqrt.pop %v1273
    %v1275 = vmul.f32 %v1267, %v1274
    %v1276 = vlaneseq
    %v1277 = vshrl.u32 %v1276, 7
    %v1278 = vsub.s32 0, %v1277
    %v1279 = vrot.slane %v1261, %v1278
    %v1280 = vmul.f32 %v1275, %v1279
    %v1281 = vlaneseq
    %v1282 = vshrl.u32 %v1281, 7
    %v1283 = vsub.s32 0, %v1282
    %v1284 = vrot.slane %v1262, %v1283
    %v1285 = vadd.f32 %v1280, %v1284
    %vm1286 = vcmp.ge.f32.partialorder %v1285, 0.0
    %v1287 = vmul.f32 %v1285, 0.2
    %v1288 = vsel %vm1286, %v1285, %v1287
    %v1289 = vpack.c.bf16 %v1288, %v1288
    %v1290 = vld [vmem:[#allocation2 + $0x118] sm:$0xf]
    %v1291 = vld [vmem:[#allocation2 + $0x11c] sm:$0xf]
    %v1292 = vld [vmem:[#allocation2 + $0x120] sm:$0xf]
    %v1293 = vld [vmem:[#allocation2 + $0x124] sm:$0xf]
    %v1294 = vld [vmem:[%s2 + $0x20] sm:$0x1]
    %v1295 = vlaneseq
    %v1296 = vshrl.u32 %v1295, 7
    %v1297 = vsub.s32 0, %v1296
    %v1298 = vrot.slane %v1294, %v1297
    %v1303 = vunpack.c.l.b16 %v1290
    %v1304 = vunpack.c.l.b16 %v1291
    %v1305 = vunpack.c.l.b16 %v1292
    %v1306 = vunpack.c.l.b16 %v1293
    %v1307 = vpack.c.b16 %v1304, %v1303
    %v1308 = vpack.c.b16 %v1306, %v1305
    %v1312 = vsel %vm413, %v1289, 0
    %1314 = vmatprep.subr.bf16.mxu0 0
    %1315 = vmatpush1.bf16.msra.mxu0 %v1307
    %1316 = vmatprep.subr.bf16.mxu0 0
    %1317 = vmatpush1.bf16.msra.mxu0 %v1308
    %1318 = vmatprep.subr.bf16.mxu0 0
    %1319 = vmatpush1.bf16.msra.mxu0 0
    %1320 = vmatprep.subr.bf16.mxu0 0
    %1321 = vmatpush1.bf16.msra.mxu0 0
    %1322 = vmatprep.subr.bf16.mxu0 0
    %1323 = vmatpush1.bf16.msra.mxu0 0
    %1324 = vmatprep.subr.bf16.mxu0 0
    %1325 = vmatpush1.bf16.msra.mxu0 0
    %1326 = vmatprep.subr.bf16.mxu0 0
    %1327 = vmatpush1.bf16.msra.mxu0 0
    %1328 = vmatprep.subr.bf16.mxu0 0
    %1329 = vmatpush1.bf16.msra.mxu0 0
    %1330 = vmatprep.subr.bf16.mxu0 0
    %1331 = vmatpush1.bf16.msra.mxu0 0
    %1332 = vmatprep.subr.bf16.mxu0 0
    %1333 = vmatpush1.bf16.msra.mxu0 0
    %1334 = vmatprep.subr.bf16.mxu0 0
    %1335 = vmatpush1.bf16.msra.mxu0 0
    %1336 = vmatprep.subr.bf16.mxu0 0
    %1337 = vmatpush1.bf16.msra.mxu0 0
    %1338 = vmatprep.subr.bf16.mxu0 0
    %1339 = vmatpush1.bf16.msra.mxu0 0
    %1340 = vmatprep.subr.bf16.mxu0 0
    %1341 = vmatpush1.bf16.msra.mxu0 0
    %1342 = vmatprep.subr.bf16.mxu0 0
    %1343 = vmatpush1.bf16.msra.mxu0 0
    %1344 = vmatprep.subr.bf16.mxu0 0
    %1345 = vmatpush1.bf16.msra.mxu0 0
    %1346 = vmatprep.mubr.bf16.mxu0 0
    %1347 = vmatmul.mubr.bf16.gmra.mrb[0].mxu0 %v1312
    %v1348 = vpop.f32.mrb[0].mxu0
    %v1349 = vadd.f32 %v1298, %v1348
    %v1350 = vpop.f32.mrb[0].mxu0
    %v1351 = vpop.f32.mrb[0].mxu0
    %v1352 = vpop.f32.mrb[0].mxu0
    %1353 = vdwg.mxu0
    %v1354 = vld [vmem:[%s2 + $0x21] sm:$0x1]
    %v1355 = vld [vmem:[%s2 + $0x22] sm:$0x1]
    %v1356 = vsel %vm142, %v1349, 0.0
    %1357 = vadd.xlane.f32.xlu0 %v1356
    %v1358 = vpop.xlane.xlu0 %1357
    %v1359 = vmul.f32 %v1358, %v146
    %v1360 = vsub.f32 %v1349, %v1359
    %v1361 = vmul.f32 %v1360, %v1360
    %v1362 = vsel %vm142, %v1361, 0.0
    %1363 = vadd.xlane.f32.xlu0 %v1362
    %v1364 = vpop.xlane.xlu0 %1363
    %v1365 = vmul.f32 %v1364, %v146
    %v1366 = vadd.f32 %v1365, 1e-05
    %v1367 = vrsqrt.pop %v1366
    %v1368 = vmul.f32 %v1360, %v1367
    %v1369 = vlaneseq
    %v1370 = vshrl.u32 %v1369, 7
    %v1371 = vsub.s32 0, %v1370
    %v1372 = vrot.slane %v1354, %v1371
    %v1373 = vmul.f32 %v1368, %v1372
    %v1374 = vlaneseq
    %v1375 = vshrl.u32 %v1374, 7
    %v1376 = vsub.s32 0, %v1375
    %v1377 = vrot.slane %v1355, %v1376
    %v1378 = vadd.f32 %v1373, %v1377
    %vm1379 = vcmp.ge.f32.partialorder %v1378, 0.0
    %v1380 = vmul.f32 %v1378, 0.2
    %v1381 = vsel %vm1379, %v1378, %v1380
    %v1382 = vpack.c.bf16 %v1381, %v1381
    %v1383 = vld [vmem:[#allocation2 + $0x128] sm:$0xf]
    %v1384 = vld [vmem:[#allocation2 + $0x12c] sm:$0xf]
    %v1385 = vld [vmem:[#allocation2 + $0x130] sm:$0xf]
    %v1386 = vld [vmem:[#allocation2 + $0x134] sm:$0xf]
    %v1387 = vld [vmem:[#allocation2 + $0x138] sm:$0xf]
    %v1388 = vld [vmem:[#allocation2 + $0x13c] sm:$0xf]
    %v1389 = vld [vmem:[#allocation2 + $0x140] sm:$0xf]
    %v1390 = vld [vmem:[#allocation2 + $0x144] sm:$0xf]
    %v1391 = vld [vmem:[%s2 + $0x23] sm:$0x1]
    %v1392 = vlaneseq
    %v1393 = vshrl.u32 %v1392, 7
    %v1394 = vsub.s32 0, %v1393
    %v1395 = vrot.slane %v1391, %v1394
    %v1404 = vunpack.c.l.b16 %v1383
    %v1405 = vunpack.c.l.b16 %v1384
    %v1406 = vunpack.c.l.b16 %v1385
    %v1407 = vunpack.c.l.b16 %v1386
    %v1408 = vunpack.c.l.b16 %v1387
    %v1409 = vunpack.c.l.b16 %v1388
    %v1410 = vunpack.c.l.b16 %v1389
    %v1411 = vunpack.c.l.b16 %v1390
    %v1412 = vpack.c.b16 %v1405, %v1404
    %v1413 = vpack.c.b16 %v1407, %v1406
    %v1414 = vpack.c.b16 %v1409, %v1408
    %v1415 = vpack.c.b16 %v1411, %v1410
    %v1421 = vsel %vm208, %v1382, 0
    %1423 = vmatprep.subr.bf16.mxu0 0
    %1424 = vmatpush1.bf16.msra.mxu0 %v1412
    %1425 = vmatprep.subr.bf16.mxu0 0
    %1426 = vmatpush1.bf16.msra.mxu0 %v1413
    %1427 = vmatprep.subr.bf16.mxu0 0
    %1428 = vmatpush1.bf16.msra.mxu0 %v1414
    %1429 = vmatprep.subr.bf16.mxu0 0
    %1430 = vmatpush1.bf16.msra.mxu0 %v1415
    %1431 = vmatprep.subr.bf16.mxu0 0
    %1432 = vmatpush1.bf16.msra.mxu0 0
    %1433 = vmatprep.subr.bf16.mxu0 0
    %1434 = vmatpush1.bf16.msra.mxu0 0
    %1435 = vmatprep.subr.bf16.mxu0 0
    %1436 = vmatpush1.bf16.msra.mxu0 0
    %1437 = vmatprep.subr.bf16.mxu0 0
    %1438 = vmatpush1.bf16.msra.mxu0 0
    %1439 = vmatprep.subr.bf16.mxu0 0
    %1440 = vmatpush1.bf16.msra.mxu0 0
    %1441 = vmatprep.subr.bf16.mxu0 0
    %1442 = vmatpush1.bf16.msra.mxu0 0
    %1443 = vmatprep.subr.bf16.mxu0 0
    %1444 = vmatpush1.bf16.msra.mxu0 0
    %1445 = vmatprep.subr.bf16.mxu0 0
    %1446 = vmatpush1.bf16.msra.mxu0 0
    %1447 = vmatprep.subr.bf16.mxu0 0
    %1448 = vmatpush1.bf16.msra.mxu0 0
    %1449 = vmatprep.subr.bf16.mxu0 0
    %1450 = vmatpush1.bf16.msra.mxu0 0
    %1451 = vmatprep.subr.bf16.mxu0 0
    %1452 = vmatpush1.bf16.msra.mxu0 0
    %1453 = vmatprep.subr.bf16.mxu0 0
    %1454 = vmatpush1.bf16.msra.mxu0 0
    %1455 = vmatprep.mubr.bf16.mxu0 0
    %1456 = vmatmul.mubr.bf16.gmra.mrb[0].mxu0 %v1421
    %v1457 = vpop.f32.mrb[0].mxu0
    %v1458 = vadd.f32 %v1395, %v1457
    %v1459 = vpop.f32.mrb[0].mxu0
    %v1460 = vpop.f32.mrb[0].mxu0
    %v1461 = vpop.f32.mrb[0].mxu0
    %1462 = vdwg.mxu0
    %v1463 = vld [vmem:[%s2 + $0x24] sm:$0x1]
    %v1464 = vld [vmem:[%s2 + $0x25] sm:$0x1]
    %v1465 = vsel %vm142, %v1458, 0.0
    %1466 = vadd.xlane.f32.xlu0 %v1465
    %v1467 = vpop.xlane.xlu0 %1466
    %v1468 = vmul.f32 %v1467, %v146
    %v1469 = vsub.f32 %v1458, %v1468
    %v1470 = vmul.f32 %v1469, %v1469
    %v1471 = vsel %vm142, %v1470, 0.0
    %1472 = vadd.xlane.f32.xlu0 %v1471
    %v1473 = vpop.xlane.xlu0 %1472
    %v1474 = vmul.f32 %v1473, %v146
    %v1475 = vadd.f32 %v1474, 1e-05
    %v1476 = vrsqrt.pop %v1475
    %v1477 = vmul.f32 %v1469, %v1476
    %v1478 = vlaneseq
    %v1479 = vshrl.u32 %v1478, 7
    %v1480 = vsub.s32 0, %v1479
    %v1481 = vrot.slane %v1463, %v1480
    %v1482 = vmul.f32 %v1477, %v1481
    %v1483 = vlaneseq
    %v1484 = vshrl.u32 %v1483, 7
    %v1485 = vsub.s32 0, %v1484
    %v1486 = vrot.slane %v1464, %v1485
    %v1487 = vadd.f32 %v1482, %v1486
    %vm1488 = vcmp.ge.f32.partialorder %v1487, 0.0
    %v1489 = vmul.f32 %v1487, 0.2
    %v1490 = vsel %vm1488, %v1487, %v1489
    %v1491 = vpack.c.bf16 %v1490, %v1490
    %v1492 = vld [vmem:[#allocation2 + $0x148] sm:$0xf]
    %v1493 = vld [vmem:[#allocation2 + $0x14c] sm:$0xf]
    %v1494 = vld [vmem:[#allocation2 + $0x150] sm:$0xf]
    %v1495 = vld [vmem:[#allocation2 + $0x154] sm:$0xf]
    %v1496 = vld [vmem:[#allocation2 + $0x158] sm:$0xf]
    %v1497 = vld [vmem:[#allocation2 + $0x15c] sm:$0xf]
    %v1498 = vld [vmem:[#allocation2 + $0x160] sm:$0xf]
    %v1499 = vld [vmem:[#allocation2 + $0x164] sm:$0xf]
    %v1500 = vld [vmem:[%s2 + $0x26] sm:$0x1]
    %v1501 = vlaneseq
    %v1502 = vshrl.u32 %v1501, 7
    %v1503 = vsub.s32 0, %v1502
    %v1504 = vrot.slane %v1500, %v1503
    %v1513 = vunpack.c.l.b16 %v1492
    %v1514 = vunpack.c.l.b16 %v1493
    %v1515 = vunpack.c.l.b16 %v1494
    %v1516 = vunpack.c.l.b16 %v1495
    %v1517 = vunpack.c.l.b16 %v1496
    %v1518 = vunpack.c.l.b16 %v1497
    %v1519 = vunpack.c.l.b16 %v1498
    %v1520 = vunpack.c.l.b16 %v1499
    %v1521 = vpack.c.b16 %v1514, %v1513
    %v1522 = vpack.c.b16 %v1516, %v1515
    %v1523 = vpack.c.b16 %v1518, %v1517
    %v1524 = vpack.c.b16 %v1520, %v1519
    %v1530 = vsel %vm208, %v1491, 0
    %1532 = vmatprep.subr.bf16.mxu0 0
    %1533 = vmatpush1.bf16.msra.mxu0 %v1521
    %1534 = vmatprep.subr.bf16.mxu0 0
    %1535 = vmatpush1.bf16.msra.mxu0 %v1522
    %1536 = vmatprep.subr.bf16.mxu0 0
    %1537 = vmatpush1.bf16.msra.mxu0 %v1523
    %1538 = vmatprep.subr.bf16.mxu0 0
    %1539 = vmatpush1.bf16.msra.mxu0 %v1524
    %1540 = vmatprep.subr.bf16.mxu0 0
    %1541 = vmatpush1.bf16.msra.mxu0 0
    %1542 = vmatprep.subr.bf16.mxu0 0
    %1543 = vmatpush1.bf16.msra.mxu0 0
    %1544 = vmatprep.subr.bf16.mxu0 0
    %1545 = vmatpush1.bf16.msra.mxu0 0
    %1546 = vmatprep.subr.bf16.mxu0 0
    %1547 = vmatpush1.bf16.msra.mxu0 0
    %1548 = vmatprep.subr.bf16.mxu0 0
    %1549 = vmatpush1.bf16.msra.mxu0 0
    %1550 = vmatprep.subr.bf16.mxu0 0
    %1551 = vmatpush1.bf16.msra.mxu0 0
    %1552 = vmatprep.subr.bf16.mxu0 0
    %1553 = vmatpush1.bf16.msra.mxu0 0
    %1554 = vmatprep.subr.bf16.mxu0 0
    %1555 = vmatpush1.bf16.msra.mxu0 0
    %1556 = vmatprep.subr.bf16.mxu0 0
    %1557 = vmatpush1.bf16.msra.mxu0 0
    %1558 = vmatprep.subr.bf16.mxu0 0
    %1559 = vmatpush1.bf16.msra.mxu0 0
    %1560 = vmatprep.subr.bf16.mxu0 0
    %1561 = vmatpush1.bf16.msra.mxu0 0
    %1562 = vmatprep.subr.bf16.mxu0 0
    %1563 = vmatpush1.bf16.msra.mxu0 0
    %1564 = vmatprep.mubr.bf16.mxu0 0
    %1565 = vmatmul.mubr.bf16.gmra.mrb[0].mxu0 %v1530
    %v1566 = vpop.f32.mrb[0].mxu0
    %v1567 = vadd.f32 %v1504, %v1566
    %v1568 = vpop.f32.mrb[0].mxu0
    %v1569 = vpop.f32.mrb[0].mxu0
    %v1570 = vpop.f32.mrb[0].mxu0
    %1571 = vdwg.mxu0
    %v1572 = vld [vmem:[%s2 + $0x27] sm:$0x1]
    %v1573 = vld [vmem:[%s2 + $0x28] sm:$0x1]
    %v1574 = vsel %vm142, %v1567, 0.0
    %1575 = vadd.xlane.f32.xlu0 %v1574
    %v1576 = vpop.xlane.xlu0 %1575
    %v1577 = vmul.f32 %v1576, %v146
    %v1578 = vsub.f32 %v1567, %v1577
    %v1579 = vmul.f32 %v1578, %v1578
    %v1580 = vsel %vm142, %v1579, 0.0
    %1581 = vadd.xlane.f32.xlu0 %v1580
    %v1582 = vpop.xlane.xlu0 %1581
    %v1583 = vmul.f32 %v1582, %v146
    %v1584 = vadd.f32 %v1583, 1e-05
    %v1585 = vrsqrt.pop %v1584
    %v1586 = vmul.f32 %v1578, %v1585
    %v1587 = vlaneseq
    %v1588 = vshrl.u32 %v1587, 7
    %v1589 = vsub.s32 0, %v1588
    %v1590 = vrot.slane %v1572, %v1589
    %v1591 = vmul.f32 %v1586, %v1590
    %v1592 = vlaneseq
    %v1593 = vshrl.u32 %v1592, 7
    %v1594 = vsub.s32 0, %v1593
    %v1595 = vrot.slane %v1573, %v1594
    %v1596 = vadd.f32 %v1591, %v1595
    %1597 = vst [vmem:[%s3] sm:$0x3f] 0.0
    %1598 = vst [vmem:[%s3] sm:$0x3] %v644
    %1599 = vst [vmem:[%s3 + $0x2] sm:$0x3] %v1097
    %1600 = vst.msk [vmem:[%s3 + $0x4] sm:$0x3] %vm142, %v1596
    %v1603 = vunpack.c.l.s4 1983009808
    %v1604 = vunpack.c.0.s8 %v1603
    %v1605 = vlaneseq
    %v1606 = vshrl.u32 %v1605, 7
    %v1607 = vsub.s32 %v1604, %v1606
    %v1608 = vrot.slane %v584, %v1607
    %1609 = vrot.lane.b32.xlu0 %v1608, 64
    %v1610 = vpop.permute.xlu0 %1609
    %vm1612 = vcmask 648704
    %1613 = vst.msk [vmem:[%s3 + $0x4] sm:$0x3] %vm1612, %v1610
    %vm1614 = vcmask 779904
    %1615 = vst.msk [vmem:[%s3 + $0x4] sm:$0x3] %vm1614, %v1610
    %v1618 = vunpack.c.l.s4 1983009808
    %v1619 = vunpack.c.0.s8 %v1618
    %v1620 = vlaneseq
    %v1621 = vshrl.u32 %v1620, 7
    %v1622 = vsub.s32 %v1619, %v1621
    %v1623 = vrot.slane %v1055, %v1622
    %1624 = vrot.lane.b32.xlu0 %v1623, 96
    %v1625 = vpop.permute.xlu0 %1624
    %vm1627 = vcmask 870144
    %1628 = vst.msk [vmem:[%s3 + $0x4] sm:$0x3] %vm1627, %v1625
    // Predicated region
    $region18: #{forward.3} parent=1 // pred_check
      _
    $region19: #{forward.3} parent=1 // pred_check_branch
      %1630 = sbr.rel (0) target = $region21
    $region20: #{forward.3} parent=1 // pred_region
      _
    $region21: #{forward.3} parent=1 // pred_fallthru
      _
    // Predicated region
    $region22: #{forward.3} parent=1 // pred_check
      _
    $region23: #{forward.3} parent=1 // pred_check_branch
      %1632 = sbr.rel (0) target = $region25
    $region24: #{forward.3} parent=1 // pred_region
      _
    $region25: #{forward.3} parent=1 // pred_fallthru
      _
    %1633 = vsyncpa [#allocation3], 1

</llo_original>
